<compile_context>
chip_gen: v7x
topology: tpu7x:2x2x1
jax: 0.10.0
libtpu: 0.0.40
codegen_flags: <defaults>
</compile_context>

<pallas_src>
import functools

import jax
import jax.numpy as jnp
from jax.experimental import pallas as pl
from jax.experimental.pallas import tpu as pltpu


# ----------------------------------------------------------------------------
# Single fused Pallas kernel: chain of (matmul + bias [+ ReLU]) layers.
# All layer weights live in VMEM for the whole call; activations never hit HBM.
# ----------------------------------------------------------------------------
def _fused_decoder_kernel(*refs, relu_flags):
    x_ref = refs[0]
    out_ref = refs[-1]
    param_refs = refs[1:-1]

    h = x_ref[...]
    for i, relu in enumerate(relu_flags):
        w = param_refs[2 * i][...]          # bf16 weights
        b = param_refs[2 * i + 1][...]      # f32 bias, shape (1, N)
        h = jnp.dot(h.astype(w.dtype), w, preferred_element_type=jnp.float32) + b
        if relu:
            h = jnp.maximum(h, 0.0)
    out_ref[...] = h.astype(out_ref.dtype)


# ----------------------------------------------------------------------------
# Chip / block-size heuristics.
# ----------------------------------------------------------------------------
def _is_multi_tensorcore_chip():
    """True on chips with >1 TensorCore per chip (v4 / v5p / v7x megacore)."""
    try:
        kind = jax.devices()[0].device_kind.lower()
    except Exception:
        return False
    return any(tag in kind for tag in ("v4", "v5p", "v7", "tpu7"))


def _row_act_bytes(k0, n_out, n_max):
    # double-buffered x tile + double-buffered out tile + live intermediates
    return 4 * (2 * k0 + 2 * n_out + 3 * n_max)


def _pick_block_m(m, k0, n_out, n_max, weight_bytes, multi_tc):
    """Block over rows. Single grid step on single-TC chips when VMEM permits;
    even number of sublane-aligned steps on multi-TC chips."""
    budget = (48 << 20) - weight_bytes - (4 << 20)
    max_bm = max(8, budget // _row_act_bytes(k0, n_out, n_max))
    if m <= 8:
        return m
    divs = [d for d in range(8, m + 1, 8) if m % d == 0]
    divs_fit = [d for d in divs if d <= max_bm]
    if multi_tc and m >= 16:
        even = [d for d in divs_fit if (m // d) % 2 == 0]
        if even:
            return max(even)
    if m <= max_bm:
        return m  # one grid step: no per-step overhead on single-TC chips
    if divs_fit:
        return max(divs_fit)
    return m  # awkward m: one full block (block dim == array dim is legal)


def _compute_vmem_limit(weight_bytes, block_m, k0, n_out, n_max):
    act = block_m * _row_act_bytes(k0, n_out, n_max)
    computed = weight_bytes + act + (4 << 20)  # slack for compiler scratch
    return int(min(max(computed, 32 << 20), 56 << 20))


def _const_block_spec(shape, single_buffer):
    """BlockSpec for a grid-constant (weight/bias) input."""
    if single_buffer:
        try:
            return pl.BlockSpec(shape, lambda i: (0,) * len(shape),
                                pipeline_mode=pl.Buffered(1))
        except TypeError:  # older Pallas without pipeline_mode
            pass
    return pl.BlockSpec(shape, lambda i: (0,) * len(shape))


# ----------------------------------------------------------------------------
# Fused forward over the whole layer chain in one pallas_call.
# ----------------------------------------------------------------------------
def fused_decoder_apply(layers, x, single_buffer_weights=True):
    """layers: list of (w, b, relu) with w: (K_i, N_i) bf16, b: (N_i,) f32.
    x: (M, K_0) f32.  Returns (M, N_last) f32."""
    m, k0 = x.shape
    n_out = layers[-1][0].shape[1]
    n_max = max([k0] + [w.shape[1] for (w, _, _) in layers])
    weight_bytes = sum(int(w.size) * w.dtype.itemsize + int(b.size) * 4
                       for (w, b, _) in layers)

    block_m = _pick_block_m(m, k0, n_out, n_max, weight_bytes,
                            _is_multi_tensorcore_chip())
    grid = (pl.cdiv(m, block_m),) if m % block_m == 0 else (1,)
    if grid == (1,):
        block_m = m

    in_specs = [pl.BlockSpec((block_m, k0), lambda i: (i, 0))]
    args = [x]
    relu_flags = []
    for (w, b, relu) in layers:
        k, n = w.shape
        in_specs.append(_const_block_spec((k, n), single_buffer_weights))
        in_specs.append(_const_block_spec((1, n), single_buffer_weights))
        args.append(w)
        args.append(b.reshape(1, n))
        relu_flags.append(relu)

    vmem_limit = _compute_vmem_limit(weight_bytes, block_m, k0, n_out, n_max)

    return pl.pallas_call(
        functools.partial(_fused_decoder_kernel, relu_flags=tuple(relu_flags)),
        out_shape=jax.ShapeDtypeStruct((m, n_out), jnp.float32),
        grid=grid,
        in_specs=in_specs,
        out_specs=pl.BlockSpec((block_m, n_out), lambda i: (i, 0)),
        compiler_params=pltpu.CompilerParams(
            dimension_semantics=("parallel",),
            vmem_limit_bytes=vmem_limit,
        ),
    )(*args)


# ----------------------------------------------------------------------------
# Init-time conversion: ConvTranspose2d -> exact dense linear map over
# flattened NCHW features (so the in-kernel hot path is pure lane-dense matmul).
# ----------------------------------------------------------------------------
def _conv_transpose_as_dense(w, bias, h_in, w_in, stride, padding):
    """Dense (Cin*H*W, Cout*OH*OW) matrix equivalent to PyTorch ConvTranspose2d.

    Uses the scatter relation oh = ih*stride + kh - padding (and likewise for
    width); flat orders are NCHW (c, h, w) on both sides, so chaining layers
    and the final reshape to (B, C, H, W) need no transposes.
    """
    cin, cout, k, _ = w.shape
    oh = (h_in - 1) * stride + k - 2 * padding
    ow = (w_in - 1) * stride + k - 2 * padding

    dense = jnp.zeros((cin, h_in, w_in, cout, oh, ow), jnp.float32)
    oh_idx = jnp.arange(oh)
    ow_idx = jnp.arange(ow)
    ih_idx = jnp.arange(h_in)
    iw_idx = jnp.arange(w_in)
    for kh in range(k):
        a_h = (oh_idx[None, :] == (ih_idx * stride + kh - padding)[:, None]).astype(jnp.float32)
        for kw in range(k):
            a_w = (ow_idx[None, :] == (iw_idx * stride + kw - padding)[:, None]).astype(jnp.float32)
            # y[c_out, oh, ow] += x[c_in, ih, iw] * w[c_in, c_out, kh, kw]
            dense = dense + jnp.einsum('io,jq,cd->cijdoq', a_h, a_w, w[:, :, kh, kw])
    dense = dense.reshape(cin * h_in * w_in, cout * oh * ow)
    bias_flat = jnp.repeat(bias, oh * ow)  # matches (c, h, w) flat order
    return dense, bias_flat, oh, ow


def _pad_layer_widths(layers):
    """Zero-pad intermediate layer widths up to multiples of 128 (lane-dense).

    Exact: padded output columns have zero weights + zero bias (stay zero
    through ReLU), and the corresponding extra input rows of the next layer are
    zero. The final output width is never padded.
    """
    padded = []
    n_layers = len(layers)
    prev_pad = 0
    for idx, (w, b, relu) in enumerate(layers):
        k, n = w.shape
        if prev_pad:
            w = jnp.concatenate([w, jnp.zeros((prev_pad, n), w.dtype)], axis=0)
        n_pad = ((-n) % 128) if idx < n_layers - 1 else 0
        if n_pad:
            w = jnp.concatenate([w, jnp.zeros((w.shape[0], n_pad), w.dtype)], axis=1)
            b = jnp.concatenate([b, jnp.zeros((n_pad,), b.dtype)])
        padded.append((w, b, relu))
        prev_pad = n_pad
    return padded


# ----------------------------------------------------------------------------
# Parameter init (deterministic, synthetic); conv weights converted to dense,
# widths padded to 128 multiples, weights cast to bf16 (biases stay f32).
# ----------------------------------------------------------------------------
def init_decoder_params(key, config):
    state_size = config['state_size']
    hidden_rev = config['dec_hidden_list_rev']
    ch_rev = config['dec_channel_list_rev']
    k_rev = config['dec_kernel_list_rev']
    s_rev = config['dec_stride_list_rev']
    c_img, h_img, w_img = config['image_shape']
    assert ch_rev[-1] == c_img

    total_stride = 1
    for s in s_rev:
        total_stride *= s
    h0, w0 = h_img // total_stride, w_img // total_stride

    layers = []  # list of (w, b, relu), f32 for now

    # MLP head: Linear+ReLU chain mapping state -> (C0*H0*W0) in NCHW flat order.
    dims = [state_size] + list(hidden_rev) + [ch_rev[0] * h0 * w0]
    for i in range(len(dims) - 1):
        key, kw_key, kb_key = jax.random.split(key, 3)
        w = jax.random.normal(kw_key, (dims[i], dims[i + 1]), jnp.float32) / jnp.sqrt(dims[i])
        b = 0.01 * jax.random.normal(kb_key, (dims[i + 1],), jnp.float32)
        layers.append((w, b, True))

    # ConvTranspose2d stack: ReLU between layers, none on the last; each layer
    # precomputed as an exact dense linear map (weight reshuffle hoisted to init).
    h_cur, w_cur = h0, w0
    n_conv = len(ch_rev) - 1
    for i in range(n_conv):
        cin, cout, k, s = ch_rev[i], ch_rev[i + 1], k_rev[i], s_rev[i]
        pad = (k - s) // 2
        key, kw_key, kb_key = jax.random.split(key, 3)
        w = jax.random.normal(kw_key, (cin, cout, k, k), jnp.float32) / jnp.sqrt(cin * k * k)
        b = 0.01 * jax.random.normal(kb_key, (cout,), jnp.float32)
        dense, bias_flat, h_cur, w_cur = _conv_transpose_as_dense(w, b, h_cur, w_cur, s, pad)
        layers.append((dense, bias_flat, i < n_conv - 1))

    assert (h_cur, w_cur) == (h_img, w_img)

    # Lane-dense padding, then bf16 weights (f32 accumulation happens in-kernel).
    layers = _pad_layer_widths(layers)
    layers = [(w.astype(jnp.bfloat16), b.astype(jnp.float32), relu)
              for (w, b, relu) in layers]

    # The fused-dense path keeps every layer weight VMEM-resident (single-
    # buffered bf16); it targets small spatial decoders (~0.5 MiB here).
    weight_bytes = sum(int(w.size) * 2 + int(b.size) * 4 for (w, b, _) in layers)
    assert weight_bytes <= 40 * 1024 * 1024, (
        "decoder weights too large for the fused VMEM-resident path")
    # TODO(synk): for large image shapes, fall back to a tiled per-layer
    # transposed-conv Pallas kernel (stride^2 phase-decomposed NHWC matmuls)
    # instead of dense layer matrices (the conv-dense maps are ~94% zeros).

    return {'layers': layers, 'image_shape': (c_img, h_img, w_img)}


# ----------------------------------------------------------------------------
# Forward pass (mirrors Decoder.forward: dec(x) then reshape to slots)
# ----------------------------------------------------------------------------
def decoder_forward(params, x, num_slots):
    try:
        y = fused_decoder_apply(params['layers'], x, single_buffer_weights=True)
    except Exception:
        # Fallback if this Pallas build rejects pipeline_mode=Buffered(1).
        y = fused_decoder_apply(params['layers'], x, single_buffer_weights=False)
    c, h, w = params['image_shape']
    y = y.reshape(x.shape[0], c, h, w)
    return y.reshape(num_slots, -1, c, h, w)


def decoder_reference(params, x, num_slots):
    """Pure-JAX reference mirroring the in-kernel math (bf16 dot, f32 accum)."""
    h = x
    for (w, b, relu) in params['layers']:
        h = jnp.dot(h.astype(w.dtype), w, preferred_element_type=jnp.float32) + b.reshape(1, -1)
        if relu:
            h = jnp.maximum(h, 0.0)
    c, hh, ww = params['image_shape']
    h = h.reshape(x.shape[0], c, hh, ww)
    return h.reshape(num_slots, -1, c, hh, ww)


# ----------------------------------------------------------------------------
if __name__ == "__main__":
    config = {
        'state_size': 32,
        'dec_hidden_list_rev': [64],
        'dec_channel_list_rev': [8, 4, 3],
        'dec_kernel_list_rev': [4, 4],
        'dec_stride_list_rev': [2, 2],
        'image_shape': (3, 16, 16),
    }
    key = jax.random.PRNGKey(0)
    kp, kx = jax.random.split(key)
    params = init_decoder_params(kp, config)

    num_slots, batch = 2, 2
    x = jax.random.normal(kx, (num_slots * batch, config['state_size']), jnp.float32)

    out = decoder_forward(params, x, num_slots)
    out = jax.block_until_ready(out)
    assert out.shape == (num_slots, batch, *config['image_shape']), out.shape
    assert out.dtype == jnp.float32

    ref = jax.block_until_ready(decoder_reference(params, x, num_slots))
    max_err = float(jnp.max(jnp.abs(out - ref)))
    assert max_err < 1e-2, f"max abs error vs reference: {max_err}"

    print("KERNEL_OK")
</pallas_src>

<mosaic_0001>
module attributes {stable_mosaic.version = 11 : i64} {
  func.func @_fused_decoder_kernel(%arg0: i32, %arg1: memref<4x32xf32, #tpu.memory_space<vmem>>, %arg2: memref<32x128xbf16, #tpu.memory_space<vmem>>, %arg3: memref<1x128xf32, #tpu.memory_space<vmem>>, %arg4: memref<128x128xbf16, #tpu.memory_space<vmem>>, %arg5: memref<1x128xf32, #tpu.memory_space<vmem>>, %arg6: memref<128x256xbf16, #tpu.memory_space<vmem>>, %arg7: memref<1x256xf32, #tpu.memory_space<vmem>>, %arg8: memref<256x768xbf16, #tpu.memory_space<vmem>>, %arg9: memref<1x768xf32, #tpu.memory_space<vmem>>, %arg10: memref<4x768xf32, #tpu.memory_space<vmem>>) attributes {dimension_semantics = [#tpu.dimension_semantics<parallel>], iteration_bounds = array<i64: 1>, scalar_prefetch = 0 : i64, scratch_operands = 0 : i64, tpu.core_type = #tpu.core_type<tc>, window_params = [{transform_indices = @transform_0, window_bounds = array<i64: 4, 32>}, {pipeline_mode = #tpu.pipeline_mode<synchronous>, transform_indices = @transform_1, window_bounds = array<i64: 32, 128>}, {pipeline_mode = #tpu.pipeline_mode<synchronous>, transform_indices = @transform_2, window_bounds = array<i64: 1, 128>}, {pipeline_mode = #tpu.pipeline_mode<synchronous>, transform_indices = @transform_3, window_bounds = array<i64: 128, 128>}, {pipeline_mode = #tpu.pipeline_mode<synchronous>, transform_indices = @transform_4, window_bounds = array<i64: 1, 128>}, {pipeline_mode = #tpu.pipeline_mode<synchronous>, transform_indices = @transform_5, window_bounds = array<i64: 128, 256>}, {pipeline_mode = #tpu.pipeline_mode<synchronous>, transform_indices = @transform_6, window_bounds = array<i64: 1, 256>}, {pipeline_mode = #tpu.pipeline_mode<synchronous>, transform_indices = @transform_7, window_bounds = array<i64: 256, 768>}, {pipeline_mode = #tpu.pipeline_mode<synchronous>, transform_indices = @transform_8, window_bounds = array<i64: 1, 768>}, {transform_indices = @transform_9, window_bounds = array<i64: 4, 768>}]} {
    %c0 = arith.constant 0 : index
    %c0_0 = arith.constant 0 : index
    %0 = vector.load %arg1[%c0, %c0_0] : memref<4x32xf32, #tpu.memory_space<vmem>>, vector<4x32xf32>
    %c0_1 = arith.constant 0 : index
    %c0_2 = arith.constant 0 : index
    %1 = vector.load %arg2[%c0_1, %c0_2] : memref<32x128xbf16, #tpu.memory_space<vmem>>, vector<32x128xbf16>
    %c0_3 = arith.constant 0 : index
    %c0_4 = arith.constant 0 : index
    %2 = vector.load %arg3[%c0_3, %c0_4] : memref<1x128xf32, #tpu.memory_space<vmem>>, vector<1x128xf32>
    %3 = arith.truncf %0 : vector<4x32xf32> to vector<4x32xbf16>
    %cst = arith.constant dense<0.000000e+00> : vector<4x128xf32>
    %4 = tpu.matmul %3, %1, %cst {dimension_numbers = #tpu.dot_dimension_numbers<[1], [0], [0], [1], [0, 0, 1, 1], [], []>} : vector<4x32xbf16>, vector<32x128xbf16>, vector<4x128xf32> -> vector<4x128xf32>
    %5 = vector.broadcast %2 : vector<1x128xf32> to vector<4x128xf32>
    %6 = arith.addf %4, %5 : vector<4x128xf32>
    %cst_5 = arith.constant 0.000000e+00 : f32
    %7 = vector.broadcast %cst_5 : f32 to vector<4x128xf32>
    %8 = arith.maximumf %6, %7 : vector<4x128xf32>
    %c0_6 = arith.constant 0 : index
    %c0_7 = arith.constant 0 : index
    %9 = vector.load %arg4[%c0_6, %c0_7] : memref<128x128xbf16, #tpu.memory_space<vmem>>, vector<128x128xbf16>
    %c0_8 = arith.constant 0 : index
    %c0_9 = arith.constant 0 : index
    %10 = vector.load %arg5[%c0_8, %c0_9] : memref<1x128xf32, #tpu.memory_space<vmem>>, vector<1x128xf32>
    %11 = arith.truncf %8 : vector<4x128xf32> to vector<4x128xbf16>
    %cst_10 = arith.constant dense<0.000000e+00> : vector<4x128xf32>
    %12 = tpu.matmul %11, %9, %cst_10 {dimension_numbers = #tpu.dot_dimension_numbers<[1], [0], [0], [1], [0, 0, 1, 1], [], []>} : vector<4x128xbf16>, vector<128x128xbf16>, vector<4x128xf32> -> vector<4x128xf32>
    %13 = vector.broadcast %10 : vector<1x128xf32> to vector<4x128xf32>
    %14 = arith.addf %12, %13 : vector<4x128xf32>
    %cst_11 = arith.constant 0.000000e+00 : f32
    %15 = vector.broadcast %cst_11 : f32 to vector<4x128xf32>
    %16 = arith.maximumf %14, %15 : vector<4x128xf32>
    %c0_12 = arith.constant 0 : index
    %c0_13 = arith.constant 0 : index
    %17 = vector.load %arg6[%c0_12, %c0_13] : memref<128x256xbf16, #tpu.memory_space<vmem>>, vector<128x256xbf16>
    %c0_14 = arith.constant 0 : index
    %c0_15 = arith.constant 0 : index
    %18 = vector.load %arg7[%c0_14, %c0_15] : memref<1x256xf32, #tpu.memory_space<vmem>>, vector<1x256xf32>
    %19 = arith.truncf %16 : vector<4x128xf32> to vector<4x128xbf16>
    %cst_16 = arith.constant dense<0.000000e+00> : vector<4x256xf32>
    %20 = tpu.matmul %19, %17, %cst_16 {dimension_numbers = #tpu.dot_dimension_numbers<[1], [0], [0], [1], [0, 0, 1, 1], [], []>} : vector<4x128xbf16>, vector<128x256xbf16>, vector<4x256xf32> -> vector<4x256xf32>
    %21 = vector.broadcast %18 : vector<1x256xf32> to vector<4x256xf32>
    %22 = arith.addf %20, %21 : vector<4x256xf32>
    %cst_17 = arith.constant 0.000000e+00 : f32
    %23 = vector.broadcast %cst_17 : f32 to vector<4x256xf32>
    %24 = arith.maximumf %22, %23 : vector<4x256xf32>
    %c0_18 = arith.constant 0 : index
    %c0_19 = arith.constant 0 : index
    %25 = vector.load %arg8[%c0_18, %c0_19] : memref<256x768xbf16, #tpu.memory_space<vmem>>, vector<256x768xbf16>
    %c0_20 = arith.constant 0 : index
    %c0_21 = arith.constant 0 : index
    %26 = vector.load %arg9[%c0_20, %c0_21] : memref<1x768xf32, #tpu.memory_space<vmem>>, vector<1x768xf32>
    %27 = arith.truncf %24 : vector<4x256xf32> to vector<4x256xbf16>
    %cst_22 = arith.constant dense<0.000000e+00> : vector<4x768xf32>
    %28 = tpu.matmul %27, %25, %cst_22 {dimension_numbers = #tpu.dot_dimension_numbers<[1], [0], [0], [1], [0, 0, 1, 1], [], []>} : vector<4x256xbf16>, vector<256x768xbf16>, vector<4x768xf32> -> vector<4x768xf32>
    %29 = vector.broadcast %26 : vector<1x768xf32> to vector<4x768xf32>
    %30 = arith.addf %28, %29 : vector<4x768xf32>
    %c0_23 = arith.constant 0 : index
    %c0_24 = arith.constant 0 : index
    %31 = vector.load %arg10[%c0_23, %c0_24] : memref<4x768xf32, #tpu.memory_space<vmem>>, vector<4x768xf32>
    tpu.vector_store %arg10[%c0_23, %c0_24], %30 {strides = array<i32>} : memref<4x768xf32, #tpu.memory_space<vmem>>, vector<4x768xf32>,
    return
  }
  func.func @transform_0(%arg0: i32) -> (i32, i32) {
    %c0_i32 = arith.constant 0 : i32
    %c0_i32_0 = arith.constant 0 : i32
    return %arg0, %c0_i32 : i32, i32
  }
  func.func @transform_1(%arg0: i32) -> (i32, i32) {
    %c0_i32 = arith.constant 0 : i32
    %c0_i32_0 = arith.constant 0 : i32
    %c0_i32_1 = arith.constant 0 : i32
    return %c0_i32, %c0_i32_0 : i32, i32
  }
  func.func @transform_2(%arg0: i32) -> (i32, i32) {
    %c0_i32 = arith.constant 0 : i32
    %c0_i32_0 = arith.constant 0 : i32
    %c0_i32_1 = arith.constant 0 : i32
    return %c0_i32, %c0_i32_0 : i32, i32
  }
  func.func @transform_3(%arg0: i32) -> (i32, i32) {
    %c0_i32 = arith.constant 0 : i32
    %c0_i32_0 = arith.constant 0 : i32
    %c0_i32_1 = arith.constant 0 : i32
    return %c0_i32, %c0_i32_0 : i32, i32
  }
  func.func @transform_4(%arg0: i32) -> (i32, i32) {
    %c0_i32 = arith.constant 0 : i32
    %c0_i32_0 = arith.constant 0 : i32
    %c0_i32_1 = arith.constant 0 : i32
    return %c0_i32, %c0_i32_0 : i32, i32
  }
  func.func @transform_5(%arg0: i32) -> (i32, i32) {
    %c0_i32 = arith.constant 0 : i32
    %c0_i32_0 = arith.constant 0 : i32
    %c0_i32_1 = arith.constant 0 : i32
    return %c0_i32, %c0_i32_0 : i32, i32
  }
  func.func @transform_6(%arg0: i32) -> (i32, i32) {
    %c0_i32 = arith.constant 0 : i32
    %c0_i32_0 = arith.constant 0 : i32
    %c0_i32_1 = arith.constant 0 : i32
    return %c0_i32, %c0_i32_0 : i32, i32
  }
  func.func @transform_7(%arg0: i32) -> (i32, i32) {
    %c0_i32 = arith.constant 0 : i32
    %c0_i32_0 = arith.constant 0 : i32
    %c0_i32_1 = arith.constant 0 : i32
    return %c0_i32, %c0_i32_0 : i32, i32
  }
  func.func @transform_8(%arg0: i32) -> (i32, i32) {
    %c0_i32 = arith.constant 0 : i32
    %c0_i32_0 = arith.constant 0 : i32
    %c0_i32_1 = arith.constant 0 : i32
    return %c0_i32, %c0_i32_0 : i32, i32
  }
  func.func @transform_9(%arg0: i32) -> (i32, i32) {
    %c0_i32 = arith.constant 0 : i32
    %c0_i32_0 = arith.constant 0 : i32
    return %arg0, %c0_i32 : i32, i32
  }
}

module attributes {stable_mosaic.version = 11 : i64} {
  func.func @_fused_decoder_kernel(%arg0: i32, %arg1: memref<4x32xf32, #tpu.memory_space<vmem>>, %arg2: memref<32x128xbf16, #tpu.memory_space<vmem>>, %arg3: memref<1x128xf32, #tpu.memory_space<vmem>>, %arg4: memref<128x128xbf16, #tpu.memory_space<vmem>>, %arg5: memref<1x128xf32, #tpu.memory_space<vmem>>, %arg6: memref<128x256xbf16, #tpu.memory_space<vmem>>, %arg7: memref<1x256xf32, #tpu.memory_space<vmem>>, %arg8: memref<256x768xbf16, #tpu.memory_space<vmem>>, %arg9: memref<1x768xf32, #tpu.memory_space<vmem>>, %arg10: memref<4x768xf32, #tpu.memory_space<vmem>>) attributes {dimension_semantics = [#tpu.dimension_semantics<parallel>], iteration_bounds = array<i64: 1>, scalar_prefetch = 0 : i64, scratch_operands = 0 : i64, tpu.core_type = #tpu.core_type<tc>, window_params = [{transform_indices = @transform_0, window_bounds = array<i64: 4, 32>}, {pipeline_mode = #tpu.pipeline_mode<synchronous>, transform_indices = @transform_1, window_bounds = array<i64: 32, 128>}, {pipeline_mode = #tpu.pipeline_mode<synchronous>, transform_indices = @transform_2, window_bounds = array<i64: 1, 128>}, {pipeline_mode = #tpu.pipeline_mode<synchronous>, transform_indices = @transform_3, window_bounds = array<i64: 128, 128>}, {pipeline_mode = #tpu.pipeline_mode<synchronous>, transform_indices = @transform_4, window_bounds = array<i64: 1, 128>}, {pipeline_mode = #tpu.pipeline_mode<synchronous>, transform_indices = @transform_5, window_bounds = array<i64: 128, 256>}, {pipeline_mode = #tpu.pipeline_mode<synchronous>, transform_indices = @transform_6, window_bounds = array<i64: 1, 256>}, {pipeline_mode = #tpu.pipeline_mode<synchronous>, transform_indices = @transform_7, window_bounds = array<i64: 256, 768>}, {pipeline_mode = #tpu.pipeline_mode<synchronous>, transform_indices = @transform_8, window_bounds = array<i64: 1, 768>}, {transform_indices = @transform_9, window_bounds = array<i64: 4, 768>}]} {
    %c0 = arith.constant 0 : index
    %c0_0 = arith.constant 0 : index
    %0 = vector.load %arg1[%c0, %c0_0] : memref<4x32xf32, #tpu.memory_space<vmem>>, vector<4x32xf32>
    %c0_1 = arith.constant 0 : index
    %c0_2 = arith.constant 0 : index
    %1 = vector.load %arg2[%c0_1, %c0_2] : memref<32x128xbf16, #tpu.memory_space<vmem>>, vector<32x128xbf16>
    %c0_3 = arith.constant 0 : index
    %c0_4 = arith.constant 0 : index
    %2 = vector.load %arg3[%c0_3, %c0_4] : memref<1x128xf32, #tpu.memory_space<vmem>>, vector<1x128xf32>
    %3 = arith.truncf %0 : vector<4x32xf32> to vector<4x32xbf16>
    %cst = arith.constant dense<0.000000e+00> : vector<4x128xf32>
    %4 = tpu.matmul %3, %1, %cst {dimension_numbers = #tpu.dot_dimension_numbers<[1], [0], [0], [1], [0, 0, 1, 1], [], []>} : vector<4x32xbf16>, vector<32x128xbf16>, vector<4x128xf32> -> vector<4x128xf32>
    %5 = vector.broadcast %2 : vector<1x128xf32> to vector<4x128xf32>
    %6 = arith.addf %4, %5 : vector<4x128xf32>
    %cst_5 = arith.constant 0.000000e+00 : f32
    %7 = vector.broadcast %cst_5 : f32 to vector<4x128xf32>
    %8 = arith.maximumf %6, %7 : vector<4x128xf32>
    %c0_6 = arith.constant 0 : index
    %c0_7 = arith.constant 0 : index
    %9 = vector.load %arg4[%c0_6, %c0_7] : memref<128x128xbf16, #tpu.memory_space<vmem>>, vector<128x128xbf16>
    %c0_8 = arith.constant 0 : index
    %c0_9 = arith.constant 0 : index
    %10 = vector.load %arg5[%c0_8, %c0_9] : memref<1x128xf32, #tpu.memory_space<vmem>>, vector<1x128xf32>
    %11 = arith.truncf %8 : vector<4x128xf32> to vector<4x128xbf16>
    %cst_10 = arith.constant dense<0.000000e+00> : vector<4x128xf32>
    %12 = tpu.matmul %11, %9, %cst_10 {dimension_numbers = #tpu.dot_dimension_numbers<[1], [0], [0], [1], [0, 0, 1, 1], [], []>} : vector<4x128xbf16>, vector<128x128xbf16>, vector<4x128xf32> -> vector<4x128xf32>
    %13 = vector.broadcast %10 : vector<1x128xf32> to vector<4x128xf32>
    %14 = arith.addf %12, %13 : vector<4x128xf32>
    %cst_11 = arith.constant 0.000000e+00 : f32
    %15 = vector.broadcast %cst_11 : f32 to vector<4x128xf32>
    %16 = arith.maximumf %14, %15 : vector<4x128xf32>
    %c0_12 = arith.constant 0 : index
    %c0_13 = arith.constant 0 : index
    %17 = vector.load %arg6[%c0_12, %c0_13] : memref<128x256xbf16, #tpu.memory_space<vmem>>, vector<128x256xbf16>
    %c0_14 = arith.constant 0 : index
    %c0_15 = arith.constant 0 : index
    %18 = vector.load %arg7[%c0_14, %c0_15] : memref<1x256xf32, #tpu.memory_space<vmem>>, vector<1x256xf32>
    %19 = arith.truncf %16 : vector<4x128xf32> to vector<4x128xbf16>
    %cst_16 = arith.constant dense<0.000000e+00> : vector<4x256xf32>
    %20 = tpu.matmul %19, %17, %cst_16 {dimension_numbers = #tpu.dot_dimension_numbers<[1], [0], [0], [1], [0, 0, 1, 1], [], []>} : vector<4x128xbf16>, vector<128x256xbf16>, vector<4x256xf32> -> vector<4x256xf32>
    %21 = vector.broadcast %18 : vector<1x256xf32> to vector<4x256xf32>
    %22 = arith.addf %20, %21 : vector<4x256xf32>
    %cst_17 = arith.constant 0.000000e+00 : f32
    %23 = vector.broadcast %cst_17 : f32 to vector<4x256xf32>
    %24 = arith.maximumf %22, %23 : vector<4x256xf32>
    %c0_18 = arith.constant 0 : index
    %c0_19 = arith.constant 0 : index
    %25 = vector.load %arg8[%c0_18, %c0_19] : memref<256x768xbf16, #tpu.memory_space<vmem>>, vector<256x768xbf16>
    %c0_20 = arith.constant 0 : index
    %c0_21 = arith.constant 0 : index
    %26 = vector.load %arg9[%c0_20, %c0_21] : memref<1x768xf32, #tpu.memory_space<vmem>>, vector<1x768xf32>
    %27 = arith.truncf %24 : vector<4x256xf32> to vector<4x256xbf16>
    %cst_22 = arith.constant dense<0.000000e+00> : vector<4x768xf32>
    %28 = tpu.matmul %27, %25, %cst_22 {dimension_numbers = #tpu.dot_dimension_numbers<[1], [0], [0], [1], [0, 0, 1, 1], [], []>} : vector<4x256xbf16>, vector<256x768xbf16>, vector<4x768xf32> -> vector<4x768xf32>
    %29 = vector.broadcast %26 : vector<1x768xf32> to vector<4x768xf32>
    %30 = arith.addf %28, %29 : vector<4x768xf32>
    %c0_23 = arith.constant 0 : index
    %c0_24 = arith.constant 0 : index
    %31 = vector.load %arg10[%c0_23, %c0_24] : memref<4x768xf32, #tpu.memory_space<vmem>>, vector<4x768xf32>
    tpu.vector_store %arg10[%c0_23, %c0_24], %30 {strides = array<i32>} : memref<4x768xf32, #tpu.memory_space<vmem>>, vector<4x768xf32>,
    return
  }
  func.func @transform_0(%arg0: i32) -> (i32, i32) {
    %c0_i32 = arith.constant 0 : i32
    %c0_i32_0 = arith.constant 0 : i32
    return %arg0, %c0_i32 : i32, i32
  }
  func.func @transform_1(%arg0: i32) -> (i32, i32) {
    %c0_i32 = arith.constant 0 : i32
    %c0_i32_0 = arith.constant 0 : i32
    %c0_i32_1 = arith.constant 0 : i32
    return %c0_i32, %c0_i32_0 : i32, i32
  }
  func.func @transform_2(%arg0: i32) -> (i32, i32) {
    %c0_i32 = arith.constant 0 : i32
    %c0_i32_0 = arith.constant 0 : i32
    %c0_i32_1 = arith.constant 0 : i32
    return %c0_i32, %c0_i32_0 : i32, i32
  }
  func.func @transform_3(%arg0: i32) -> (i32, i32) {
    %c0_i32 = arith.constant 0 : i32
    %c0_i32_0 = arith.constant 0 : i32
    %c0_i32_1 = arith.constant 0 : i32
    return %c0_i32, %c0_i32_0 : i32, i32
  }
  func.func @transform_4(%arg0: i32) -> (i32, i32) {
    %c0_i32 = arith.constant 0 : i32
    %c0_i32_0 = arith.constant 0 : i32
    %c0_i32_1 = arith.constant 0 : i32
    return %c0_i32, %c0_i32_0 : i32, i32
  }
  func.func @transform_5(%arg0: i32) -> (i32, i32) {
    %c0_i32 = arith.constant 0 : i32
    %c0_i32_0 = arith.constant 0 : i32
    %c0_i32_1 = arith.constant 0 : i32
    return %c0_i32, %c0_i32_0 : i32, i32
  }
  func.func @transform_6(%arg0: i32) -> (i32, i32) {
    %c0_i32 = arith.constant 0 : i32
    %c0_i32_0 = arith.constant 0 : i32
    %c0_i32_1 = arith.constant 0 : i32
    return %c0_i32, %c0_i32_0 : i32, i32
  }
  func.func @transform_7(%arg0: i32) -> (i32, i32) {
    %c0_i32 = arith.constant 0 : i32
    %c0_i32_0 = arith.constant 0 : i32
    %c0_i32_1 = arith.constant 0 : i32
    return %c0_i32, %c0_i32_0 : i32, i32
  }
  func.func @transform_8(%arg0: i32) -> (i32, i32) {
    %c0_i32 = arith.constant 0 : i32
    %c0_i32_0 = arith.constant 0 : i32
    %c0_i32_1 = arith.constant 0 : i32
    return %c0_i32, %c0_i32_0 : i32, i32
  }
  func.func @transform_9(%arg0: i32) -> (i32, i32) {
    %c0_i32 = arith.constant 0 : i32
    %c0_i32_0 = arith.constant 0 : i32
    return %arg0, %c0_i32 : i32, i32
  }
}

</mosaic_0001>

<llo_original>
// kernel: tpu_custom_call.1
$region0: #{tpu_custom_call.1}
  #allocation0 [shape = 'u32[]', space=smem, size = 0x4, offset = 0x4, fixed_abs, tag = 'smem constant byte address 0x4 - core index']
  #allocation1 [shape = 'u32[144,128]{1,0:T(1,128)}', space=vmem, size = 0x12000, scoped, tag = 'internal scratch']
  %s0 = inlined_call_operand.hbm [shape: f32[4,32], index: 0, kind: input, shape index: {}]
  %s1 = inlined_call_operand.hbm [shape: bf16[32,128], index: 1, kind: input, shape index: {}]
  %s2 = inlined_call_operand.vmem [shape: f32[1,128], index: 2, kind: input, shape index: {}]
  %s3 = inlined_call_operand.hbm [shape: bf16[128,128], index: 3, kind: input, shape index: {}]
  %s4 = inlined_call_operand.vmem [shape: f32[1,128], index: 4, kind: input, shape index: {}]
  %s5 = inlined_call_operand.hbm [shape: bf16[128,256], index: 5, kind: input, shape index: {}]
  %s6 = inlined_call_operand.vmem [shape: f32[1,256], index: 6, kind: input, shape index: {}]
  %s7 = inlined_call_operand.hbm [shape: bf16[256,768], index: 7, kind: input, shape index: {}]
  %s8 = inlined_call_operand.vmem [shape: f32[1,768], index: 8, kind: input, shape index: {}]
  %s9 = inlined_call_operand.hbm [shape: f32[4,768], index: 9, kind: output, shape index: {}]
  %s10 = sld [smem:[#allocation0]]
  $region66: #{tpu_custom_call.1} parent=0
    _
  %s12 = ssub.s32 1, %s10
  %s13 = scalar_select 0, %s12, %s10
  $region1: #{tpu_custom_call.1} parent=0
    #allocation2 [shape = 'u8[2048]{0}', space=vmem, size = 0x800, scoped, tag = 'input window, operand 0, single buffered']
    #allocation3 [shape = 's32[1]{0}', space=sflag, size = 0x4, scoped, tag = 'scoped memory for tpu_custom_call.1']
    #allocation4 [shape = 's32[1]{0}', space=sflag, size = 0x4, scoped, tag = 'scoped memory for tpu_custom_call.1']
    #allocation5 [shape = 'u8[8192]{0}', space=vmem, size = 0x2000, scoped, tag = 'input window, operand 1, single buffered']
    #allocation6 [shape = 's32[1]{0}', space=sflag, size = 0x4, scoped, tag = 'scoped memory for tpu_custom_call.1']
    #allocation7 [shape = 'u8[32768]{0}', space=vmem, size = 0x8000, scoped, tag = 'input window, operand 3, single buffered']
    #allocation8 [shape = 'u8[65536]{0}', space=vmem, size = 0x10000, scoped, tag = 'input window, operand 5, single buffered']
    #allocation9 [shape = 's32[1]{0}', space=sflag, size = 0x4, scoped, tag = 'scoped memory for tpu_custom_call.1']
    #allocation10 [shape = 'u8[393216]{0}', space=vmem, size = 0x60000, scoped, tag = 'input window, operand 7, single buffered']
    #allocation11 [shape = 'u8[12288]{0}', space=vmem, size = 0x3000, scoped, tag = 'output window, operand 0, single buffered']
    %14 = vsyncpa [#allocation3], 0
    %15 = vsyncpa [#allocation6], 0
    %16 = vsyncpa [#allocation9], 0
    %17 = vsyncpa [#allocation4], 0
    // Predicated region
    $region2: #{tpu_custom_call.1} parent=1 // pred_check
      _
    $region3: #{tpu_custom_call.1} parent=1 // pred_check_branch
      %19 = sbr.rel (0) target = $region5
    $region4: #{tpu_custom_call.1} parent=1 // pred_region
      %s21 = ssub.s32 64, 64
      %22 = vsyncadd [#allocation3], %s21
      %s24 = sshll.u32 [#allocation2], 4
      %s25 = int_to_ptr.vmem [resolvable:$true] %s24
      %27 = dma.hbm_to_vmem [thread:$0]  %s0, 64, %s25, [#allocation3]
    $region5: #{tpu_custom_call.1} parent=1 // pred_fallthru
      _
    // Predicated region
    $region6: #{tpu_custom_call.1} parent=1 // pred_check
      _
    $region7: #{tpu_custom_call.1} parent=1 // pred_check_branch
      %29 = sbr.rel (0) target = $region9
    $region8: #{tpu_custom_call.1} parent=1 // pred_region
      %s31 = ssub.s32 256, 256
      %32 = vsyncadd [#allocation6], %s31
      %s33 = sshll.u32 [#allocation5], 4
      %s34 = int_to_ptr.vmem [resolvable:$true] %s33
      %39 = dma.hbm_to_vmem [thread:$0]  %s1, 256, %s34, [#allocation6], 64, 64, 4
    $region9: #{tpu_custom_call.1} parent=1 // pred_fallthru
      _
    // Predicated region
    $region10: #{tpu_custom_call.1} parent=1 // pred_check
      _
    $region11: #{tpu_custom_call.1} parent=1 // pred_check_branch
      %41 = sbr.rel (0) target = $region13
    $region12: #{tpu_custom_call.1} parent=1 // pred_region
      _
    $region13: #{tpu_custom_call.1} parent=1 // pred_fallthru
      _
    // Predicated region
    $region14: #{tpu_custom_call.1} parent=1 // pred_check
      _
    $region15: #{tpu_custom_call.1} parent=1 // pred_check_branch
      %43 = sbr.rel (0) target = $region17
    $region16: #{tpu_custom_call.1} parent=1 // pred_region
      %s45 = ssub.s32 1024, 1024
      %46 = vsyncadd [#allocation6], %s45
      %s47 = sshll.u32 [#allocation7], 4
      %s48 = int_to_ptr.vmem [resolvable:$true] %s47
      %53 = dma.hbm_to_vmem [thread:$0]  %s3, 1024, %s48, [#allocation6], 64, 64, 4
    $region17: #{tpu_custom_call.1} parent=1 // pred_fallthru
      _
    // Predicated region
    $region18: #{tpu_custom_call.1} parent=1 // pred_check
      _
    $region19: #{tpu_custom_call.1} parent=1 // pred_check_branch
      %55 = sbr.rel (0) target = $region21
    $region20: #{tpu_custom_call.1} parent=1 // pred_region
      _
    $region21: #{tpu_custom_call.1} parent=1 // pred_fallthru
      _
    // Predicated region
    $region22: #{tpu_custom_call.1} parent=1 // pred_check
      _
    $region23: #{tpu_custom_call.1} parent=1 // pred_check_branch
      %57 = sbr.rel (0) target = $region25
    $region24: #{tpu_custom_call.1} parent=1 // pred_region
      %s59 = ssub.s32 2048, 2048
      %60 = vsyncadd [#allocation9], %s59
      %s61 = sshll.u32 [#allocation8], 4
      %s62 = int_to_ptr.vmem [resolvable:$true] %s61
      %67 = dma.hbm_to_vmem [thread:$0]  %s5, 2048, %s62, [#allocation9], 128, 128, 8
    $region25: #{tpu_custom_call.1} parent=1 // pred_fallthru
      _
    // Predicated region
    $region26: #{tpu_custom_call.1} parent=1 // pred_check
      _
    $region27: #{tpu_custom_call.1} parent=1 // pred_check_branch
      %69 = sbr.rel (0) target = $region29
    $region28: #{tpu_custom_call.1} parent=1 // pred_region
      _
    $region29: #{tpu_custom_call.1} parent=1 // pred_fallthru
      _
    // Predicated region
    $region30: #{tpu_custom_call.1} parent=1 // pred_check
      _
    $region31: #{tpu_custom_call.1} parent=1 // pred_check_branch
      %71 = sbr.rel (0) target = $region33
    $region32: #{tpu_custom_call.1} parent=1 // pred_region
      %s73 = ssub.s32 12288, 12288
      %74 = vsyncadd [#allocation9], %s73
      %s75 = sshll.u32 [#allocation10], 4
      %s76 = int_to_ptr.vmem [resolvable:$true] %s75
      %81 = dma.hbm_to_vmem [thread:$0]  %s7, 12288, %s76, [#allocation9], 384, 384, 24
    $region33: #{tpu_custom_call.1} parent=1 // pred_fallthru
      _
    // Predicated region
    $region34: #{tpu_custom_call.1} parent=1 // pred_check
      _
    $region35: #{tpu_custom_call.1} parent=1 // pred_check_branch
      %83 = sbr.rel (0) target = $region37
    $region36: #{tpu_custom_call.1} parent=1 // pred_region
      _
    $region37: #{tpu_custom_call.1} parent=1 // pred_fallthru
      _
    // Predicated region
    $region38: #{tpu_custom_call.1} parent=1 // pred_check
      _
    $region39: #{tpu_custom_call.1} parent=1 // pred_check_branch
      %85 = sbr.rel (0) target = $region41
    $region40: #{tpu_custom_call.1} parent=1 // pred_region
      %86 = dma.done [#allocation3], 64
    $region41: #{tpu_custom_call.1} parent=1 // pred_fallthru
      _
    // Predicated region
    $region42: #{tpu_custom_call.1} parent=1 // pred_check
      _
    $region43: #{tpu_custom_call.1} parent=1 // pred_check_branch
      %88 = sbr.rel (0) target = $region45
    $region44: #{tpu_custom_call.1} parent=1 // pred_region
      %89 = dma.done [#allocation6], 256
    $region45: #{tpu_custom_call.1} parent=1 // pred_fallthru
      _
    // Predicated region
    $region46: #{tpu_custom_call.1} parent=1 // pred_check
      _
    $region47: #{tpu_custom_call.1} parent=1 // pred_check_branch
      %91 = sbr.rel (0) target = $region49
    $region48: #{tpu_custom_call.1} parent=1 // pred_region
      %92 = dma.done [#allocation6], 1024
    $region49: #{tpu_custom_call.1} parent=1 // pred_fallthru
      _
    // Predicated region
    $region50: #{tpu_custom_call.1} parent=1 // pred_check
      _
    $region51: #{tpu_custom_call.1} parent=1 // pred_check_branch
      %94 = sbr.rel (0) target = $region53
    $region52: #{tpu_custom_call.1} parent=1 // pred_region
      %95 = dma.done [#allocation9], 2048
    $region53: #{tpu_custom_call.1} parent=1 // pred_fallthru
      _
    // Predicated region
    $region54: #{tpu_custom_call.1} parent=1 // pred_check
      _
    $region55: #{tpu_custom_call.1} parent=1 // pred_check_branch
      %97 = sbr.rel (0) target = $region57
    $region56: #{tpu_custom_call.1} parent=1 // pred_region
      %98 = dma.done [#allocation9], 12288
    $region57: #{tpu_custom_call.1} parent=1 // pred_fallthru
      _
    %v100 = vld [vmem:[#allocation2] sm:$0xf]
    %v101 = vld [vmem:[#allocation5] sm:$0xf]
    %v102 = vld [vmem:[#allocation5 + $0x4] sm:$0xf]
    %v103 = vld [vmem:[#allocation5 + $0x8] sm:$0xf]
    %v104 = vld [vmem:[#allocation5 + $0xc] sm:$0xf]
    %v105 = vld [vmem:[%s2] sm:$0x1]
    %v106 = vpack.c.bf16 %v100, %v100
    %v108 = vlaneseq
    %v109 = vshrl.u32 %v108, 7
    %v110 = vsub.s32 0, %v109
    %v111 = vrot.slane %v105, %v110
    %v117 = vunpack.c.l.b16 %v101
    %v118 = vunpack.c.l.b16 %v102
    %v119 = vunpack.c.l.b16 %v103
    %v120 = vunpack.c.l.b16 %v104
    %v121 = vpack.c.b16 %v118, %v117
    %v122 = vpack.c.b16 %v120, %v119
    %vm125 = vcmask 261120
    %v127 = vsel %vm125, %v106, 0
    %129 = vmatprep.subr.bf16.mxu0 0
    %130 = vmatpush1.bf16.msra.mxu0 %v121
    %131 = vmatprep.subr.bf16.mxu0 0
    %132 = vmatpush1.bf16.msra.mxu0 %v122
    %133 = vmatprep.subr.bf16.mxu0 0
    %134 = vmatpush1.bf16.msra.mxu0 0
    %135 = vmatprep.subr.bf16.mxu0 0
    %136 = vmatpush1.bf16.msra.mxu0 0
    %137 = vmatprep.subr.bf16.mxu0 0
    %138 = vmatpush1.bf16.msra.mxu0 0
    %139 = vmatprep.subr.bf16.mxu0 0
    %140 = vmatpush1.bf16.msra.mxu0 0
    %141 = vmatprep.subr.bf16.mxu0 0
    %142 = vmatpush1.bf16.msra.mxu0 0
    %143 = vmatprep.subr.bf16.mxu0 0
    %144 = vmatpush1.bf16.msra.mxu0 0
    %145 = vmatprep.subr.bf16.mxu0 0
    %146 = vmatpush1.bf16.msra.mxu0 0
    %147 = vmatprep.subr.bf16.mxu0 0
    %148 = vmatpush1.bf16.msra.mxu0 0
    %149 = vmatprep.subr.bf16.mxu0 0
    %150 = vmatpush1.bf16.msra.mxu0 0
    %151 = vmatprep.subr.bf16.mxu0 0
    %152 = vmatpush1.bf16.msra.mxu0 0
    %153 = vmatprep.subr.bf16.mxu0 0
    %154 = vmatpush1.bf16.msra.mxu0 0
    %155 = vmatprep.subr.bf16.mxu0 0
    %156 = vmatpush1.bf16.msra.mxu0 0
    %157 = vmatprep.subr.bf16.mxu0 0
    %158 = vmatpush1.bf16.msra.mxu0 0
    %159 = vmatprep.subr.bf16.mxu0 0
    %160 = vmatpush1.bf16.msra.mxu0 0
    %161 = vmatprep.mubr.bf16.mxu0 0
    %162 = vmatmul.mubr.bf16.gmra.mrb[0].mxu0 %v127
    %v163 = vpop.f32.mrb[0].mxu0
    %v164 = vadd.f32 %v111, %v163
    %v165 = vpop.f32.mrb[0].mxu0
    %v166 = vpop.f32.mrb[0].mxu0
    %v167 = vpop.f32.mrb[0].mxu0
    %168 = vdwg.mxu0
    %v169 = vmax.f32 %v164, 0.0
    %v170 = vld [vmem:[#allocation7] sm:$0xf]
    %v171 = vld [vmem:[#allocation7 + $0x4] sm:$0xf]
    %v172 = vld [vmem:[#allocation7 + $0x8] sm:$0xf]
    %v173 = vld [vmem:[#allocation7 + $0xc] sm:$0xf]
    %v174 = vld [vmem:[#allocation7 + $0x10] sm:$0xf]
    %v175 = vld [vmem:[#allocation7 + $0x14] sm:$0xf]
    %v176 = vld [vmem:[#allocation7 + $0x18] sm:$0xf]
    %v177 = vld [vmem:[#allocation7 + $0x1c] sm:$0xf]
    %v178 = vld [vmem:[#allocation7 + $0x20] sm:$0xf]
    %v179 = vld [vmem:[#allocation7 + $0x24] sm:$0xf]
    %v180 = vld [vmem:[#allocation7 + $0x28] sm:$0xf]
    %v181 = vld [vmem:[#allocation7 + $0x2c] sm:$0xf]
    %v182 = vld [vmem:[#allocation7 + $0x30] sm:$0xf]
    %v183 = vld [vmem:[#allocation7 + $0x34] sm:$0xf]
    %v184 = vld [vmem:[#allocation7 + $0x38] sm:$0xf]
    %v185 = vld [vmem:[#allocation7 + $0x3c] sm:$0xf]
    %v186 = vld [vmem:[%s4] sm:$0x1]
    %v187 = vpack.c.bf16 %v169, %v169
    %v189 = vlaneseq
    %v190 = vshrl.u32 %v189, 7
    %v191 = vsub.s32 0, %v190
    %v192 = vrot.slane %v186, %v191
    %v210 = vunpack.c.l.b16 %v170
    %v211 = vunpack.c.l.b16 %v171
    %v212 = vunpack.c.l.b16 %v172
    %v213 = vunpack.c.l.b16 %v173
    %v214 = vunpack.c.l.b16 %v174
    %v215 = vunpack.c.l.b16 %v175
    %v216 = vunpack.c.l.b16 %v176
    %v217 = vunpack.c.l.b16 %v177
    %v218 = vunpack.c.l.b16 %v178
    %v219 = vunpack.c.l.b16 %v179
    %v220 = vunpack.c.l.b16 %v180
    %v221 = vunpack.c.l.b16 %v181
    %v222 = vunpack.c.l.b16 %v182
    %v223 = vunpack.c.l.b16 %v183
    %v224 = vunpack.c.l.b16 %v184
    %v225 = vunpack.c.l.b16 %v185
    %v226 = vpack.c.b16 %v211, %v210
    %v227 = vpack.c.b16 %v213, %v212
    %v228 = vpack.c.b16 %v215, %v214
    %v229 = vpack.c.b16 %v217, %v216
    %v230 = vpack.c.b16 %v219, %v218
    %v231 = vpack.c.b16 %v221, %v220
    %v232 = vpack.c.b16 %v223, %v222
    %v233 = vpack.c.b16 %v225, %v224
    %242 = vmatprep.subr.bf16.mxu0 0
    %243 = vmatpush1.bf16.msra.mxu0 %v226
    %244 = vmatprep.subr.bf16.mxu0 0
    %245 = vmatpush1.bf16.msra.mxu0 %v227
    %246 = vmatprep.subr.bf16.mxu0 0
    %247 = vmatpush1.bf16.msra.mxu0 %v228
    %248 = vmatprep.subr.bf16.mxu0 0
    %249 = vmatpush1.bf16.msra.mxu0 %v229
    %250 = vmatprep.subr.bf16.mxu0 0
    %251 = vmatpush1.bf16.msra.mxu0 %v230
    %252 = vmatprep.subr.bf16.mxu0 0
    %253 = vmatpush1.bf16.msra.mxu0 %v231
    %254 = vmatprep.subr.bf16.mxu0 0
    %255 = vmatpush1.bf16.msra.mxu0 %v232
    %256 = vmatprep.subr.bf16.mxu0 0
    %257 = vmatpush1.bf16.msra.mxu0 %v233
    %258 = vmatprep.subr.bf16.mxu0 0
    %259 = vmatpush1.bf16.msra.mxu0 0
    %260 = vmatprep.subr.bf16.mxu0 0
    %261 = vmatpush1.bf16.msra.mxu0 0
    %262 = vmatprep.subr.bf16.mxu0 0
    %263 = vmatpush1.bf16.msra.mxu0 0
    %264 = vmatprep.subr.bf16.mxu0 0
    %265 = vmatpush1.bf16.msra.mxu0 0
    %266 = vmatprep.subr.bf16.mxu0 0
    %267 = vmatpush1.bf16.msra.mxu0 0
    %268 = vmatprep.subr.bf16.mxu0 0
    %269 = vmatpush1.bf16.msra.mxu0 0
    %270 = vmatprep.subr.bf16.mxu0 0
    %271 = vmatpush1.bf16.msra.mxu0 0
    %272 = vmatprep.subr.bf16.mxu0 0
    %273 = vmatpush1.bf16.msra.mxu0 0
    %274 = vmatprep.mubr.bf16.mxu0 0
    %275 = vmatmul.mubr.bf16.gmra.mrb[0].mxu0 %v187
    %v276 = vpop.f32.mrb[0].mxu0
    %v277 = vadd.f32 %v192, %v276
    %v278 = vpop.f32.mrb[0].mxu0
    %v279 = vpop.f32.mrb[0].mxu0
    %v280 = vpop.f32.mrb[0].mxu0
    %281 = vdwg.mxu0
    %v282 = vmax.f32 %v277, 0.0
    %v283 = vld [vmem:[#allocation8] sm:$0xff]
    %v284 = vld [vmem:[#allocation8 + $0x8] sm:$0xff]
    %v285 = vld [vmem:[#allocation8 + $0x10] sm:$0xff]
    %v286 = vld [vmem:[#allocation8 + $0x18] sm:$0xff]
    %v287 = vld [vmem:[#allocation8 + $0x20] sm:$0xff]
    %v288 = vld [vmem:[#allocation8 + $0x28] sm:$0xff]
    %v289 = vld [vmem:[#allocation8 + $0x30] sm:$0xff]
    %v290 = vld [vmem:[#allocation8 + $0x38] sm:$0xff]
    %v291 = vld [vmem:[#allocation8 + $0x40] sm:$0xff]
    %v292 = vld [vmem:[#allocation8 + $0x48] sm:$0xff]
    %v293 = vld [vmem:[#allocation8 + $0x50] sm:$0xff]
    %v294 = vld [vmem:[#allocation8 + $0x58] sm:$0xff]
    %v295 = vld [vmem:[#allocation8 + $0x60] sm:$0xff]
    %v296 = vld [vmem:[#allocation8 + $0x68] sm:$0xff]
    %v297 = vld [vmem:[#allocation8 + $0x70] sm:$0xff]
    %v298 = vld [vmem:[#allocation8 + $0x78] sm:$0xff]
    %v299 = vld [vmem:[%s6] sm:$0x3]
    %v300 = vpack.c.bf16 %v282, %v282
    %v302 = vlaneseq
    %v303 = vshrl.u32 %v302, 7
    %v304 = vsub.s32 0, %v303
    %v305 = vrot.slane %v299, %v304
    %v306 = vlaneseq
    %v307 = vshrl.u32 %v306, 7
    %v308 = vsub.s32 1, %v307
    %v309 = vrot.slane %v299, %v308
    %v328 = vunpack.c.l.b16 %v283
    %v329 = vunpack.c.h.b16 %v283
    %v330 = vunpack.c.l.b16 %v284
    %v331 = vunpack.c.h.b16 %v284
    %v332 = vunpack.c.l.b16 %v285
    %v333 = vunpack.c.h.b16 %v285
    %v334 = vunpack.c.l.b16 %v286
    %v335 = vunpack.c.h.b16 %v286
    %v336 = vunpack.c.l.b16 %v287
    %v337 = vunpack.c.h.b16 %v287
    %v338 = vunpack.c.l.b16 %v288
    %v339 = vunpack.c.h.b16 %v288
    %v340 = vunpack.c.l.b16 %v289
    %v341 = vunpack.c.h.b16 %v289
    %v342 = vunpack.c.l.b16 %v290
    %v343 = vunpack.c.h.b16 %v290
    %v344 = vunpack.c.l.b16 %v291
    %v345 = vunpack.c.h.b16 %v291
    %v346 = vunpack.c.l.b16 %v292
    %v347 = vunpack.c.h.b16 %v292
    %v348 = vunpack.c.l.b16 %v293
    %v349 = vunpack.c.h.b16 %v293
    %v350 = vunpack.c.l.b16 %v294
    %v351 = vunpack.c.h.b16 %v294
    %v352 = vunpack.c.l.b16 %v295
    %v353 = vunpack.c.h.b16 %v295
    %v354 = vunpack.c.l.b16 %v296
    %v355 = vunpack.c.h.b16 %v296
    %v356 = vunpack.c.l.b16 %v297
    %v357 = vunpack.c.h.b16 %v297
    %v358 = vunpack.c.l.b16 %v298
    %v359 = vunpack.c.h.b16 %v298
    %v360 = vpack.c.b16 %v330, %v328
    %v361 = vpack.c.b16 %v331, %v329
    %v362 = vpack.c.b16 %v334, %v332
    %v363 = vpack.c.b16 %v335, %v333
    %v364 = vpack.c.b16 %v338, %v336
    %v365 = vpack.c.b16 %v339, %v337
    %v366 = vpack.c.b16 %v342, %v340
    %v367 = vpack.c.b16 %v343, %v341
    %v368 = vpack.c.b16 %v346, %v344
    %v369 = vpack.c.b16 %v347, %v345
    %v370 = vpack.c.b16 %v350, %v348
    %v371 = vpack.c.b16 %v351, %v349
    %v372 = vpack.c.b16 %v354, %v352
    %v373 = vpack.c.b16 %v355, %v353
    %v374 = vpack.c.b16 %v358, %v356
    %v375 = vpack.c.b16 %v359, %v357
    %392 = vmatprep.subr.bf16.mxu0 %v361
    %393 = vmatpush1.bf16.msra.mxu0 %v360
    %394 = vmatprep.subr.bf16.mxu0 %v363
    %395 = vmatpush1.bf16.msra.mxu0 %v362
    %396 = vmatprep.subr.bf16.mxu0 %v365
    %397 = vmatpush1.bf16.msra.mxu0 %v364
    %398 = vmatprep.subr.bf16.mxu0 %v367
    %399 = vmatpush1.bf16.msra.mxu0 %v366
    %400 = vmatprep.subr.bf16.mxu0 %v369
    %401 = vmatpush1.bf16.msra.mxu0 %v368
    %402 = vmatprep.subr.bf16.mxu0 %v371
    %403 = vmatpush1.bf16.msra.mxu0 %v370
    %404 = vmatprep.subr.bf16.mxu0 %v373
    %405 = vmatpush1.bf16.msra.mxu0 %v372
    %406 = vmatprep.subr.bf16.mxu0 %v375
    %407 = vmatpush1.bf16.msra.mxu0 %v374
    %408 = vmatprep.subr.bf16.mxu0 0
    %409 = vmatpush1.bf16.msra.mxu0 0
    %410 = vmatprep.subr.bf16.mxu0 0
    %411 = vmatpush1.bf16.msra.mxu0 0
    %412 = vmatprep.subr.bf16.mxu0 0
    %413 = vmatpush1.bf16.msra.mxu0 0
    %414 = vmatprep.subr.bf16.mxu0 0
    %415 = vmatpush1.bf16.msra.mxu0 0
    %416 = vmatprep.subr.bf16.mxu0 0
    %417 = vmatpush1.bf16.msra.mxu0 0
    %418 = vmatprep.subr.bf16.mxu0 0
    %419 = vmatpush1.bf16.msra.mxu0 0
    %420 = vmatprep.subr.bf16.mxu0 0
    %421 = vmatpush1.bf16.msra.mxu0 0
    %422 = vmatprep.subr.bf16.mxu0 0
    %423 = vmatpush1.bf16.msra.mxu0 0
    %424 = vmatprep.mubr.bf16.mxu0 0
    %425 = vmatmul.mubr.bf16.gmra.mrb[0].mxu0 %v300
    %v426 = vpop.f32.mrb[0].mxu0
    %v427 = vadd.f32 %v305, %v426
    %v428 = vpop.f32.mrb[0].mxu0
    %v429 = vadd.f32 %v309, %v428
    %v430 = vpop.f32.mrb[0].mxu0
    %v431 = vpop.f32.mrb[0].mxu0
    %432 = vdwg.mxu0
    %v433 = vmax.f32 %v427, 0.0
    %v434 = vmax.f32 %v429, 0.0
    %v435 = vld [vmem:[#allocation10] sm:$0xff]
    %v436 = vld [vmem:[#allocation10 + $0x8] sm:$0xff]
    %v437 = vld [vmem:[#allocation10 + $0x10] sm:$0xff]
    %v438 = vld [vmem:[#allocation10 + $0x18] sm:$0xff]
    %v439 = vld [vmem:[#allocation10 + $0x20] sm:$0xff]
    %v440 = vld [vmem:[#allocation10 + $0x28] sm:$0xff]
    %v441 = vld [vmem:[#allocation10 + $0x30] sm:$0xff]
    %v442 = vld [vmem:[#allocation10 + $0x38] sm:$0xff]
    %v443 = vld [vmem:[#allocation10 + $0x40] sm:$0xff]
    %v444 = vld [vmem:[#allocation10 + $0x48] sm:$0xff]
    %v445 = vld [vmem:[#allocation10 + $0x50] sm:$0xff]
    %v446 = vld [vmem:[#allocation10 + $0x58] sm:$0xff]
    %v447 = vld [vmem:[#allocation10 + $0x60] sm:$0xff]
    %v448 = vld [vmem:[#allocation10 + $0x68] sm:$0xff]
    %v449 = vld [vmem:[#allocation10 + $0x70] sm:$0xff]
    %v450 = vld [vmem:[#allocation10 + $0x78] sm:$0xff]
    %v451 = vld [vmem:[#allocation10 + $0x80] sm:$0xff]
    %v452 = vld [vmem:[#allocation10 + $0x88] sm:$0xff]
    %v453 = vld [vmem:[#allocation10 + $0x90] sm:$0xff]
    %v454 = vld [vmem:[#allocation10 + $0x98] sm:$0xff]
    %v455 = vld [vmem:[#allocation10 + $0xa0] sm:$0xff]
    %v456 = vld [vmem:[#allocation10 + $0xa8] sm:$0xff]
    %v457 = vld [vmem:[#allocation10 + $0xb0] sm:$0xff]
    %v458 = vld [vmem:[#allocation10 + $0xb8] sm:$0xff]
    %v459 = vld [vmem:[#allocation10 + $0xc0] sm:$0xff]
    %v460 = vld [vmem:[#allocation10 + $0xc8] sm:$0xff]
    %v461 = vld [vmem:[#allocation10 + $0xd0] sm:$0xff]
    %v462 = vld [vmem:[#allocation10 + $0xd8] sm:$0xff]
    %v463 = vld [vmem:[#allocation10 + $0xe0] sm:$0xff]
    %v464 = vld [vmem:[#allocation10 + $0xe8] sm:$0xff]
    %v465 = vld [vmem:[#allocation10 + $0xf0] sm:$0xff]
    %v466 = vld [vmem:[#allocation10 + $0xf8] sm:$0xff]
    %v467 = vld [vmem:[#allocation10 + $0x100] sm:$0xff]
    %v468 = vld [vmem:[#allocation10 + $0x108] sm:$0xff]
    %v469 = vld [vmem:[#allocation10 + $0x110] sm:$0xff]
    %v470 = vld [vmem:[#allocation10 + $0x118] sm:$0xff]
    %v471 = vld [vmem:[#allocation10 + $0x120] sm:$0xff]
    %v472 = vld [vmem:[#allocation10 + $0x128] sm:$0xff]
    %v473 = vld [vmem:[#allocation10 + $0x130] sm:$0xff]
    %v474 = vld [vmem:[#allocation10 + $0x138] sm:$0xff]
    %v475 = vld [vmem:[#allocation10 + $0x140] sm:$0xff]
    %v476 = vld [vmem:[#allocation10 + $0x148] sm:$0xff]
    %v477 = vld [vmem:[#allocation10 + $0x150] sm:$0xff]
    %v478 = vld [vmem:[#allocation10 + $0x158] sm:$0xff]
    %v479 = vld [vmem:[#allocation10 + $0x160] sm:$0xff]
    %v480 = vld [vmem:[#allocation10 + $0x168] sm:$0xff]
    %v481 = vld [vmem:[#allocation10 + $0x170] sm:$0xff]
    %v482 = vld [vmem:[#allocation10 + $0x178] sm:$0xff]
    %v483 = vld [vmem:[#allocation10 + $0x180] sm:$0xff]
    %v484 = vld [vmem:[#allocation10 + $0x188] sm:$0xff]
    %v485 = vld [vmem:[#allocation10 + $0x190] sm:$0xff]
    %v486 = vld [vmem:[#allocation10 + $0x198] sm:$0xff]
    %v487 = vld [vmem:[#allocation10 + $0x1a0] sm:$0xff]
    %v488 = vld [vmem:[#allocation10 + $0x1a8] sm:$0xff]
    %v489 = vld [vmem:[#allocation10 + $0x1b0] sm:$0xff]
    %v490 = vld [vmem:[#allocation10 + $0x1b8] sm:$0xff]
    %v491 = vld [vmem:[#allocation10 + $0x1c0] sm:$0xff]
    %v492 = vld [vmem:[#allocation10 + $0x1c8] sm:$0xff]
    %v493 = vld [vmem:[#allocation10 + $0x1d0] sm:$0xff]
    %v494 = vld [vmem:[#allocation10 + $0x1d8] sm:$0xff]
    %v495 = vld [vmem:[#allocation10 + $0x1e0] sm:$0xff]
    %v496 = vld [vmem:[#allocation10 + $0x1e8] sm:$0xff]
    %v497 = vld [vmem:[#allocation10 + $0x1f0] sm:$0xff]
    %v498 = vld [vmem:[#allocation10 + $0x1f8] sm:$0xff]
    %v499 = vld [vmem:[#allocation10 + $0x200] sm:$0xff]
    %v500 = vld [vmem:[#allocation10 + $0x208] sm:$0xff]
    %v501 = vld [vmem:[#allocation10 + $0x210] sm:$0xff]
    %v502 = vld [vmem:[#allocation10 + $0x218] sm:$0xff]
    %v503 = vld [vmem:[#allocation10 + $0x220] sm:$0xff]
    %v504 = vld [vmem:[#allocation10 + $0x228] sm:$0xff]
    %v505 = vld [vmem:[#allocation10 + $0x230] sm:$0xff]
    %v506 = vld [vmem:[#allocation10 + $0x238] sm:$0xff]
    %v507 = vld [vmem:[#allocation10 + $0x240] sm:$0xff]
    %v508 = vld [vmem:[#allocation10 + $0x248] sm:$0xff]
    %v509 = vld [vmem:[#allocation10 + $0x250] sm:$0xff]
    %v510 = vld [vmem:[#allocation10 + $0x258] sm:$0xff]
    %v511 = vld [vmem:[#allocation10 + $0x260] sm:$0xff]
    %v512 = vld [vmem:[#allocation10 + $0x268] sm:$0xff]
    %v513 = vld [vmem:[#allocation10 + $0x270] sm:$0xff]
    %v514 = vld [vmem:[#allocation10 + $0x278] sm:$0xff]
    %v515 = vld [vmem:[#allocation10 + $0x280] sm:$0xff]
    %v516 = vld [vmem:[#allocation10 + $0x288] sm:$0xff]
    %v517 = vld [vmem:[#allocation10 + $0x290] sm:$0xff]
    %v518 = vld [vmem:[#allocation10 + $0x298] sm:$0xff]
    %v519 = vld [vmem:[#allocation10 + $0x2a0] sm:$0xff]
    %v520 = vld [vmem:[#allocation10 + $0x2a8] sm:$0xff]
    %v521 = vld [vmem:[#allocation10 + $0x2b0] sm:$0xff]
    %v522 = vld [vmem:[#allocation10 + $0x2b8] sm:$0xff]
    %v523 = vld [vmem:[#allocation10 + $0x2c0] sm:$0xff]
    %v524 = vld [vmem:[#allocation10 + $0x2c8] sm:$0xff]
    %v525 = vld [vmem:[#allocation10 + $0x2d0] sm:$0xff]
    %v526 = vld [vmem:[#allocation10 + $0x2d8] sm:$0xff]
    %v527 = vld [vmem:[#allocation10 + $0x2e0] sm:$0xff]
    %v528 = vld [vmem:[#allocation10 + $0x2e8] sm:$0xff]
    %v529 = vld [vmem:[#allocation10 + $0x2f0] sm:$0xff]
    %v530 = vld [vmem:[#allocation10 + $0x2f8] sm:$0xff]
    %v531 = vld [vmem:[%s8] sm:$0x3f]
    %v532 = vpack.c.bf16 %v433, %v433
    %v533 = vpack.c.bf16 %v434, %v434
    %v535 = vlaneseq
    %v536 = vshrl.u32 %v535, 7
    %v537 = vsub.s32 0, %v536
    %v538 = vrot.slane %v531, %v537
    %v539 = vlaneseq
    %v540 = vshrl.u32 %v539, 7
    %v541 = vsub.s32 1, %v540
    %v542 = vrot.slane %v531, %v541
    %v543 = vlaneseq
    %v544 = vshrl.u32 %v543, 7
    %v545 = vsub.s32 2, %v544
    %v546 = vrot.slane %v531, %v545
    %v547 = vlaneseq
    %v548 = vshrl.u32 %v547, 7
    %v549 = vsub.s32 3, %v548
    %v550 = vrot.slane %v531, %v549
    %v551 = vlaneseq
    %v552 = vshrl.u32 %v551, 7
    %v553 = vsub.s32 4, %v552
    %v554 = vrot.slane %v531, %v553
    %v555 = vlaneseq
    %v556 = vshrl.u32 %v555, 7
    %v557 = vsub.s32 5, %v556
    %v558 = vrot.slane %v531, %v557
    %v661 = vunpack.c.l.b16 %v435
    %v662 = vunpack.c.h.b16 %v435
    %v663 = vunpack.c.l.b16 %v436
    %v664 = vunpack.c.h.b16 %v436
    %v665 = vunpack.c.l.b16 %v437
    %v666 = vunpack.c.h.b16 %v437
    %v667 = vunpack.c.l.b16 %v438
    %v668 = vunpack.c.h.b16 %v438
    %v669 = vunpack.c.l.b16 %v439
    %v670 = vunpack.c.h.b16 %v439
    %v671 = vunpack.c.l.b16 %v440
    %v672 = vunpack.c.h.b16 %v440
    %v673 = vunpack.c.l.b16 %v441
    %v674 = vunpack.c.h.b16 %v441
    %v675 = vunpack.c.l.b16 %v442
    %v676 = vunpack.c.h.b16 %v442
    %v677 = vunpack.c.l.b16 %v443
    %v678 = vunpack.c.h.b16 %v443
    %v679 = vunpack.c.l.b16 %v444
    %v680 = vunpack.c.h.b16 %v444
    %v681 = vunpack.c.l.b16 %v445
    %v682 = vunpack.c.h.b16 %v445
    %v683 = vunpack.c.l.b16 %v446
    %v684 = vunpack.c.h.b16 %v446
    %v685 = vunpack.c.l.b16 %v447
    %v686 = vunpack.c.h.b16 %v447
    %v687 = vunpack.c.l.b16 %v448
    %v688 = vunpack.c.h.b16 %v448
    %v689 = vunpack.c.l.b16 %v449
    %v690 = vunpack.c.h.b16 %v449
    %v691 = vunpack.c.l.b16 %v450
    %v692 = vunpack.c.h.b16 %v450
    %v693 = vunpack.c.l.b16 %v451
    %v694 = vunpack.c.h.b16 %v451
    %v695 = vunpack.c.l.b16 %v452
    %v696 = vunpack.c.h.b16 %v452
    %v697 = vunpack.c.l.b16 %v453
    %v698 = vunpack.c.h.b16 %v453
    %v699 = vunpack.c.l.b16 %v454
    %v700 = vunpack.c.h.b16 %v454
    %v701 = vunpack.c.l.b16 %v455
    %v702 = vunpack.c.h.b16 %v455
    %v703 = vunpack.c.l.b16 %v456
    %v704 = vunpack.c.h.b16 %v456
    %v705 = vunpack.c.l.b16 %v457
    %v706 = vunpack.c.h.b16 %v457
    %v707 = vunpack.c.l.b16 %v458
    %v708 = vunpack.c.h.b16 %v458
    %v709 = vunpack.c.l.b16 %v459
    %v710 = vunpack.c.h.b16 %v459
    %v711 = vunpack.c.l.b16 %v460
    %v712 = vunpack.c.h.b16 %v460
    %v713 = vunpack.c.l.b16 %v461
    %v714 = vunpack.c.h.b16 %v461
    %v715 = vunpack.c.l.b16 %v462
    %v716 = vunpack.c.h.b16 %v462
    %v717 = vunpack.c.l.b16 %v463
    %v718 = vunpack.c.h.b16 %v463
    %v719 = vunpack.c.l.b16 %v464
    %v720 = vunpack.c.h.b16 %v464
    %v721 = vunpack.c.l.b16 %v465
    %v722 = vunpack.c.h.b16 %v465
    %v723 = vunpack.c.l.b16 %v466
    %v724 = vunpack.c.h.b16 %v466
    %v725 = vunpack.c.l.b16 %v467
    %v726 = vunpack.c.h.b16 %v467
    %v727 = vunpack.c.l.b16 %v468
    %v728 = vunpack.c.h.b16 %v468
    %v729 = vunpack.c.l.b16 %v469
    %v730 = vunpack.c.h.b16 %v469
    %v731 = vunpack.c.l.b16 %v470
    %v732 = vunpack.c.h.b16 %v470
    %v733 = vunpack.c.l.b16 %v471
    %v734 = vunpack.c.h.b16 %v471
    %v735 = vunpack.c.l.b16 %v472
    %v736 = vunpack.c.h.b16 %v472
    %v737 = vunpack.c.l.b16 %v473
    %v738 = vunpack.c.h.b16 %v473
    %v739 = vunpack.c.l.b16 %v474
    %v740 = vunpack.c.h.b16 %v474
    %v741 = vunpack.c.l.b16 %v475
    %v742 = vunpack.c.h.b16 %v475
    %v743 = vunpack.c.l.b16 %v476
    %v744 = vunpack.c.h.b16 %v476
    %v745 = vunpack.c.l.b16 %v477
    %v746 = vunpack.c.h.b16 %v477
    %v747 = vunpack.c.l.b16 %v478
    %v748 = vunpack.c.h.b16 %v478
    %v749 = vunpack.c.l.b16 %v479
    %v750 = vunpack.c.h.b16 %v479
    %v751 = vunpack.c.l.b16 %v480
    %v752 = vunpack.c.h.b16 %v480
    %v753 = vunpack.c.l.b16 %v481
    %v754 = vunpack.c.h.b16 %v481
    %v755 = vunpack.c.l.b16 %v482
    %v756 = vunpack.c.h.b16 %v482
    %v757 = vunpack.c.l.b16 %v483
    %v758 = vunpack.c.h.b16 %v483
    %v759 = vunpack.c.l.b16 %v484
    %v760 = vunpack.c.h.b16 %v484
    %v761 = vunpack.c.l.b16 %v485
    %v762 = vunpack.c.h.b16 %v485
    %v763 = vunpack.c.l.b16 %v486
    %v764 = vunpack.c.h.b16 %v486
    %v765 = vunpack.c.l.b16 %v487
    %v766 = vunpack.c.h.b16 %v487
    %v767 = vunpack.c.l.b16 %v488
    %v768 = vunpack.c.h.b16 %v488
    %v769 = vunpack.c.l.b16 %v489
    %v770 = vunpack.c.h.b16 %v489
    %v771 = vunpack.c.l.b16 %v490
    %v772 = vunpack.c.h.b16 %v490
    %v773 = vunpack.c.l.b16 %v491
    %v774 = vunpack.c.h.b16 %v491
    %v775 = vunpack.c.l.b16 %v492
    %v776 = vunpack.c.h.b16 %v492
    %v777 = vunpack.c.l.b16 %v493
    %v778 = vunpack.c.h.b16 %v493
    %v779 = vunpack.c.l.b16 %v494
    %v780 = vunpack.c.h.b16 %v494
    %v781 = vunpack.c.l.b16 %v495
    %v782 = vunpack.c.h.b16 %v495
    %v783 = vunpack.c.l.b16 %v496
    %v784 = vunpack.c.h.b16 %v496
    %v785 = vunpack.c.l.b16 %v497
    %v786 = vunpack.c.h.b16 %v497
    %v787 = vunpack.c.l.b16 %v498
    %v788 = vunpack.c.h.b16 %v498
    %v789 = vunpack.c.l.b16 %v499
    %v790 = vunpack.c.h.b16 %v499
    %v791 = vunpack.c.l.b16 %v500
    %v792 = vunpack.c.h.b16 %v500
    %v793 = vunpack.c.l.b16 %v501
    %v794 = vunpack.c.h.b16 %v501
    %v795 = vunpack.c.l.b16 %v502
    %v796 = vunpack.c.h.b16 %v502
    %v797 = vunpack.c.l.b16 %v503
    %v798 = vunpack.c.h.b16 %v503
    %v799 = vunpack.c.l.b16 %v504
    %v800 = vunpack.c.h.b16 %v504
    %v801 = vunpack.c.l.b16 %v505
    %v802 = vunpack.c.h.b16 %v505
    %v803 = vunpack.c.l.b16 %v506
    %v804 = vunpack.c.h.b16 %v506
    %v805 = vunpack.c.l.b16 %v507
    %v806 = vunpack.c.h.b16 %v507
    %v807 = vunpack.c.l.b16 %v508
    %v808 = vunpack.c.h.b16 %v508
    %v809 = vunpack.c.l.b16 %v509
    %v810 = vunpack.c.h.b16 %v509
    %v811 = vunpack.c.l.b16 %v510
    %v812 = vunpack.c.h.b16 %v510
    %v813 = vunpack.c.l.b16 %v511
    %v814 = vunpack.c.h.b16 %v511
    %v815 = vunpack.c.l.b16 %v512
    %v816 = vunpack.c.h.b16 %v512
    %v817 = vunpack.c.l.b16 %v513
    %v818 = vunpack.c.h.b16 %v513
    %v819 = vunpack.c.l.b16 %v514
    %v820 = vunpack.c.h.b16 %v514
    %v821 = vunpack.c.l.b16 %v515
    %v822 = vunpack.c.h.b16 %v515
    %v823 = vunpack.c.l.b16 %v516
    %v824 = vunpack.c.h.b16 %v516
    %v825 = vunpack.c.l.b16 %v517
    %v826 = vunpack.c.h.b16 %v517
    %v827 = vunpack.c.l.b16 %v518
    %v828 = vunpack.c.h.b16 %v518
    %v829 = vunpack.c.l.b16 %v519
    %v830 = vunpack.c.h.b16 %v519
    %v831 = vunpack.c.l.b16 %v520
    %v832 = vunpack.c.h.b16 %v520
    %v833 = vunpack.c.l.b16 %v521
    %v834 = vunpack.c.h.b16 %v521
    %v835 = vunpack.c.l.b16 %v522
    %v836 = vunpack.c.h.b16 %v522
    %v837 = vunpack.c.l.b16 %v523
    %v838 = vunpack.c.h.b16 %v523
    %v839 = vunpack.c.l.b16 %v524
    %v840 = vunpack.c.h.b16 %v524
    %v841 = vunpack.c.l.b16 %v525
    %v842 = vunpack.c.h.b16 %v525
    %v843 = vunpack.c.l.b16 %v526
    %v844 = vunpack.c.h.b16 %v526
    %v845 = vunpack.c.l.b16 %v527
    %v846 = vunpack.c.h.b16 %v527
    %v847 = vunpack.c.l.b16 %v528
    %v848 = vunpack.c.h.b16 %v528
    %v849 = vunpack.c.l.b16 %v529
    %v850 = vunpack.c.h.b16 %v529
    %v851 = vunpack.c.l.b16 %v530
    %v852 = vunpack.c.h.b16 %v530
    %v853 = vpack.c.b16 %v667, %v661
    %v854 = vpack.c.b16 %v668, %v662
    %v855 = vpack.c.b16 %v669, %v663
    %v856 = vpack.c.b16 %v670, %v664
    %v857 = vpack.c.b16 %v671, %v665
    %v858 = vpack.c.b16 %v672, %v666
    %v859 = vpack.c.b16 %v679, %v673
    %v860 = vpack.c.b16 %v680, %v674
    %v861 = vpack.c.b16 %v681, %v675
    %v862 = vpack.c.b16 %v682, %v676
    %v863 = vpack.c.b16 %v683, %v677
    %v864 = vpack.c.b16 %v684, %v678
    %v865 = vpack.c.b16 %v691, %v685
    %v866 = vpack.c.b16 %v692, %v686
    %v867 = vpack.c.b16 %v693, %v687
    %v868 = vpack.c.b16 %v694, %v688
    %v869 = vpack.c.b16 %v695, %v689
    %v870 = vpack.c.b16 %v696, %v690
    %v871 = vpack.c.b16 %v703, %v697
    %v872 = vpack.c.b16 %v704, %v698
    %v873 = vpack.c.b16 %v705, %v699
    %v874 = vpack.c.b16 %v706, %v700
    %v875 = vpack.c.b16 %v707, %v701
    %v876 = vpack.c.b16 %v708, %v702
    %v877 = vpack.c.b16 %v715, %v709
    %v878 = vpack.c.b16 %v716, %v710
    %v879 = vpack.c.b16 %v717, %v711
    %v880 = vpack.c.b16 %v718, %v712
    %v881 = vpack.c.b16 %v719, %v713
    %v882 = vpack.c.b16 %v720, %v714
    %v883 = vpack.c.b16 %v727, %v721
    %v884 = vpack.c.b16 %v728, %v722
    %v885 = vpack.c.b16 %v729, %v723
    %v886 = vpack.c.b16 %v730, %v724
    %v887 = vpack.c.b16 %v731, %v725
    %v888 = vpack.c.b16 %v732, %v726
    %v889 = vpack.c.b16 %v739, %v733
    %v890 = vpack.c.b16 %v740, %v734
    %v891 = vpack.c.b16 %v741, %v735
    %v892 = vpack.c.b16 %v742, %v736
    %v893 = vpack.c.b16 %v743, %v737
    %v894 = vpack.c.b16 %v744, %v738
    %v895 = vpack.c.b16 %v751, %v745
    %v896 = vpack.c.b16 %v752, %v746
    %v897 = vpack.c.b16 %v753, %v747
    %v898 = vpack.c.b16 %v754, %v748
    %v899 = vpack.c.b16 %v755, %v749
    %v900 = vpack.c.b16 %v756, %v750
    %v901 = vpack.c.b16 %v763, %v757
    %v902 = vpack.c.b16 %v764, %v758
    %v903 = vpack.c.b16 %v765, %v759
    %v904 = vpack.c.b16 %v766, %v760
    %v905 = vpack.c.b16 %v767, %v761
    %v906 = vpack.c.b16 %v768, %v762
    %v907 = vpack.c.b16 %v775, %v769
    %v908 = vpack.c.b16 %v776, %v770
    %v909 = vpack.c.b16 %v777, %v771
    %v910 = vpack.c.b16 %v778, %v772
    %v911 = vpack.c.b16 %v779, %v773
    %v912 = vpack.c.b16 %v780, %v774
    %v913 = vpack.c.b16 %v787, %v781
    %v914 = vpack.c.b16 %v788, %v782
    %v915 = vpack.c.b16 %v789, %v783
    %v916 = vpack.c.b16 %v790, %v784
    %v917 = vpack.c.b16 %v791, %v785
    %v918 = vpack.c.b16 %v792, %v786
    %v919 = vpack.c.b16 %v799, %v793
    %v920 = vpack.c.b16 %v800, %v794
    %v921 = vpack.c.b16 %v801, %v795
    %v922 = vpack.c.b16 %v802, %v796
    %v923 = vpack.c.b16 %v803, %v797
    %v924 = vpack.c.b16 %v804, %v798
    %v925 = vpack.c.b16 %v811, %v805
    %v926 = vpack.c.b16 %v812, %v806
    %v927 = vpack.c.b16 %v813, %v807
    %v928 = vpack.c.b16 %v814, %v808
    %v929 = vpack.c.b16 %v815, %v809
    %v930 = vpack.c.b16 %v816, %v810
    %v931 = vpack.c.b16 %v823, %v817
    %v932 = vpack.c.b16 %v824, %v818
    %v933 = vpack.c.b16 %v825, %v819
    %v934 = vpack.c.b16 %v826, %v820
    %v935 = vpack.c.b16 %v827, %v821
    %v936 = vpack.c.b16 %v828, %v822
    %v937 = vpack.c.b16 %v835, %v829
    %v938 = vpack.c.b16 %v836, %v830
    %v939 = vpack.c.b16 %v837, %v831
    %v940 = vpack.c.b16 %v838, %v832
    %v941 = vpack.c.b16 %v839, %v833
    %v942 = vpack.c.b16 %v840, %v834
    %v943 = vpack.c.b16 %v847, %v841
    %v944 = vpack.c.b16 %v848, %v842
    %v945 = vpack.c.b16 %v849, %v843
    %v946 = vpack.c.b16 %v850, %v844
    %v947 = vpack.c.b16 %v851, %v845
    %v948 = vpack.c.b16 %v852, %v846
    %1045 = vmatprep.subr.bf16.mxu0 %v854
    %1046 = vmatpush1.bf16.msra.mxu0 %v853
    %1047 = vmatprep.subr.bf16.mxu0 %v860
    %1048 = vmatpush1.bf16.msra.mxu0 %v859
    %1049 = vmatprep.subr.bf16.mxu0 %v866
    %1050 = vmatpush1.bf16.msra.mxu0 %v865
    %1051 = vmatprep.subr.bf16.mxu0 %v872
    %1052 = vmatpush1.bf16.msra.mxu0 %v871
    %1053 = vmatprep.subr.bf16.mxu0 %v878
    %1054 = vmatpush1.bf16.msra.mxu0 %v877
    %1055 = vmatprep.subr.bf16.mxu0 %v884
    %1056 = vmatpush1.bf16.msra.mxu0 %v883
    %1057 = vmatprep.subr.bf16.mxu0 %v890
    %1058 = vmatpush1.bf16.msra.mxu0 %v889
    %1059 = vmatprep.subr.bf16.mxu0 %v896
    %1060 = vmatpush1.bf16.msra.mxu0 %v895
    %1061 = vmatprep.subr.bf16.mxu0 %v902
    %1062 = vmatpush1.bf16.msra.mxu0 %v901
    %1063 = vmatprep.subr.bf16.mxu0 %v908
    %1064 = vmatpush1.bf16.msra.mxu0 %v907
    %1065 = vmatprep.subr.bf16.mxu0 %v914
    %1066 = vmatpush1.bf16.msra.mxu0 %v913
    %1067 = vmatprep.subr.bf16.mxu0 %v920
    %1068 = vmatpush1.bf16.msra.mxu0 %v919
    %1069 = vmatprep.subr.bf16.mxu0 %v926
    %1070 = vmatpush1.bf16.msra.mxu0 %v925
    %1071 = vmatprep.subr.bf16.mxu0 %v932
    %1072 = vmatpush1.bf16.msra.mxu0 %v931
    %1073 = vmatprep.subr.bf16.mxu0 %v938
    %1074 = vmatpush1.bf16.msra.mxu0 %v937
    %1075 = vmatprep.subr.bf16.mxu0 %v944
    %1076 = vmatpush1.bf16.msra.mxu0 %v943
    %1077 = vmatprep.mubr.bf16.mxu0 %v533
    %1078 = vmatmul.mubr.bf16.gmra.mrb[0].mxu0 %v532
    %v1079 = vpop.f32.mrb[0].mxu0
    %v1080 = vadd.f32 %v538, %v1079
    %v1081 = vpop.f32.mrb[0].mxu0
    %v1082 = vadd.f32 %v542, %v1081
    %v1083 = vpop.f32.mrb[0].mxu0
    %v1084 = vpop.f32.mrb[0].mxu0
    %1085 = vdwg.mxu0
    %1086 = vmatprep.subr.bf16.mxu0 %v856
    %1087 = vmatpush1.bf16.msra.mxu0 %v855
    %1088 = vmatprep.subr.bf16.mxu0 %v862
    %1089 = vmatpush1.bf16.msra.mxu0 %v861
    %1090 = vmatprep.subr.bf16.mxu0 %v868
    %1091 = vmatpush1.bf16.msra.mxu0 %v867
    %1092 = vmatprep.subr.bf16.mxu0 %v874
    %1093 = vmatpush1.bf16.msra.mxu0 %v873
    %1094 = vmatprep.subr.bf16.mxu0 %v880
    %1095 = vmatpush1.bf16.msra.mxu0 %v879
    %1096 = vmatprep.subr.bf16.mxu0 %v886
    %1097 = vmatpush1.bf16.msra.mxu0 %v885
    %1098 = vmatprep.subr.bf16.mxu0 %v892
    %1099 = vmatpush1.bf16.msra.mxu0 %v891
    %1100 = vmatprep.subr.bf16.mxu0 %v898
    %1101 = vmatpush1.bf16.msra.mxu0 %v897
    %1102 = vmatprep.subr.bf16.mxu0 %v904
    %1103 = vmatpush1.bf16.msra.mxu0 %v903
    %1104 = vmatprep.subr.bf16.mxu0 %v910
    %1105 = vmatpush1.bf16.msra.mxu0 %v909
    %1106 = vmatprep.subr.bf16.mxu0 %v916
    %1107 = vmatpush1.bf16.msra.mxu0 %v915
    %1108 = vmatprep.subr.bf16.mxu0 %v922
    %1109 = vmatpush1.bf16.msra.mxu0 %v921
    %1110 = vmatprep.subr.bf16.mxu0 %v928
    %1111 = vmatpush1.bf16.msra.mxu0 %v927
    %1112 = vmatprep.subr.bf16.mxu0 %v934
    %1113 = vmatpush1.bf16.msra.mxu0 %v933
    %1114 = vmatprep.subr.bf16.mxu0 %v940
    %1115 = vmatpush1.bf16.msra.mxu0 %v939
    %1116 = vmatprep.subr.bf16.mxu0 %v946
    %1117 = vmatpush1.bf16.msra.mxu0 %v945
    %1118 = vmatprep.mubr.bf16.mxu0 %v533
    %1119 = vmatmul.mubr.bf16.gmra.mrb[0].mxu0 %v532
    %v1120 = vpop.f32.mrb[0].mxu0
    %v1121 = vadd.f32 %v546, %v1120
    %v1122 = vpop.f32.mrb[0].mxu0
    %v1123 = vadd.f32 %v550, %v1122
    %v1124 = vpop.f32.mrb[0].mxu0
    %v1125 = vpop.f32.mrb[0].mxu0
    %1126 = vdwg.mxu0
    %1127 = vmatprep.subr.bf16.mxu0 %v858
    %1128 = vmatpush1.bf16.msra.mxu0 %v857
    %1129 = vmatprep.subr.bf16.mxu0 %v864
    %1130 = vmatpush1.bf16.msra.mxu0 %v863
    %1131 = vmatprep.subr.bf16.mxu0 %v870
    %1132 = vmatpush1.bf16.msra.mxu0 %v869
    %1133 = vmatprep.subr.bf16.mxu0 %v876
    %1134 = vmatpush1.bf16.msra.mxu0 %v875
    %1135 = vmatprep.subr.bf16.mxu0 %v882
    %1136 = vmatpush1.bf16.msra.mxu0 %v881
    %1137 = vmatprep.subr.bf16.mxu0 %v888
    %1138 = vmatpush1.bf16.msra.mxu0 %v887
    %1139 = vmatprep.subr.bf16.mxu0 %v894
    %1140 = vmatpush1.bf16.msra.mxu0 %v893
    %1141 = vmatprep.subr.bf16.mxu0 %v900
    %1142 = vmatpush1.bf16.msra.mxu0 %v899
    %1143 = vmatprep.subr.bf16.mxu0 %v906
    %1144 = vmatpush1.bf16.msra.mxu0 %v905
    %1145 = vmatprep.subr.bf16.mxu0 %v912
    %1146 = vmatpush1.bf16.msra.mxu0 %v911
    %1147 = vmatprep.subr.bf16.mxu0 %v918
    %1148 = vmatpush1.bf16.msra.mxu0 %v917
    %1149 = vmatprep.subr.bf16.mxu0 %v924
    %1150 = vmatpush1.bf16.msra.mxu0 %v923
    %1151 = vmatprep.subr.bf16.mxu0 %v930
    %1152 = vmatpush1.bf16.msra.mxu0 %v929
    %1153 = vmatprep.subr.bf16.mxu0 %v936
    %1154 = vmatpush1.bf16.msra.mxu0 %v935
    %1155 = vmatprep.subr.bf16.mxu0 %v942
    %1156 = vmatpush1.bf16.msra.mxu0 %v941
    %1157 = vmatprep.subr.bf16.mxu0 %v948
    %1158 = vmatpush1.bf16.msra.mxu0 %v947
    %1159 = vmatprep.mubr.bf16.mxu0 %v533
    %1160 = vmatmul.mubr.bf16.gmra.mrb[0].mxu0 %v532
    %v1161 = vpop.f32.mrb[0].mxu0
    %v1162 = vadd.f32 %v554, %v1161
    %v1163 = vpop.f32.mrb[0].mxu0
    %v1164 = vadd.f32 %v558, %v1163
    %v1165 = vpop.f32.mrb[0].mxu0
    %v1166 = vpop.f32.mrb[0].mxu0
    %1167 = vdwg.mxu0
    %v1174 = vcombine.low %v1080, %v1082
    %v1175 = vcombine.low %v1121, %v1123
    %v1176 = vcombine.low %v1162, %v1164
    %1180 = vst [vmem:[#allocation11] sm:$0xff] %v1174
    %1181 = vst [vmem:[#allocation11 + $0x8] sm:$0xff] %v1175
    %1182 = vst [vmem:[#allocation11 + $0x10] sm:$0xff] %v1176
    // Predicated region
    $region58: #{tpu_custom_call.1} parent=1 // pred_check
      _
    $region59: #{tpu_custom_call.1} parent=1 // pred_check_branch
      %1184 = sbr.rel (0) target = $region61
    $region60: #{tpu_custom_call.1} parent=1 // pred_region
      %s1186 = ssub.s32 384, 384
      %1187 = vsyncadd [#allocation4], %s1186
      %s1189 = sshll.u32 [#allocation11], 4
      %s1190 = int_to_ptr.vmem [resolvable:$true] %s1189
      %1192 = dma.vmem_to_hbm [thread:$0]  %s1190, 384, %s9, [#allocation4]
    $region61: #{tpu_custom_call.1} parent=1 // pred_fallthru
      _
    // Predicated region
    $region62: #{tpu_custom_call.1} parent=1 // pred_check
      _
    $region63: #{tpu_custom_call.1} parent=1 // pred_check_branch
      %1194 = sbr.rel (0) target = $region65
    $region64: #{tpu_custom_call.1} parent=1 // pred_region
      %1195 = dma.done [#allocation4], 384
    $region65: #{tpu_custom_call.1} parent=1 // pred_fallthru
      _
    %1196 = vsyncpa [#allocation3], 1
    %1197 = vsyncpa [#allocation6], 1
    %1198 = vsyncpa [#allocation9], 1
    %1199 = vsyncpa [#allocation4], 1

// kernel: tpu_custom_call.1
$region0: #{tpu_custom_call.1}
  #allocation0 [shape = 'u32[]', space=smem, size = 0x4, offset = 0x4, fixed_abs, tag = 'smem constant byte address 0x4 - core index']
  #allocation1 [shape = 'u32[144,128]{1,0:T(1,128)}', space=vmem, size = 0x12000, scoped, tag = 'internal scratch']
  %s0 = inlined_call_operand.hbm [shape: f32[4,32], index: 0, kind: input, shape index: {}]
  %s1 = inlined_call_operand.hbm [shape: bf16[32,128], index: 1, kind: input, shape index: {}]
  %s2 = inlined_call_operand.vmem [shape: f32[1,128], index: 2, kind: input, shape index: {}]
  %s3 = inlined_call_operand.hbm [shape: bf16[128,128], index: 3, kind: input, shape index: {}]
  %s4 = inlined_call_operand.vmem [shape: f32[1,128], index: 4, kind: input, shape index: {}]
  %s5 = inlined_call_operand.hbm [shape: bf16[128,256], index: 5, kind: input, shape index: {}]
  %s6 = inlined_call_operand.vmem [shape: f32[1,256], index: 6, kind: input, shape index: {}]
  %s7 = inlined_call_operand.hbm [shape: bf16[256,768], index: 7, kind: input, shape index: {}]
  %s8 = inlined_call_operand.vmem [shape: f32[1,768], index: 8, kind: input, shape index: {}]
  %s9 = inlined_call_operand.hbm [shape: f32[4,768], index: 9, kind: output, shape index: {}]
  %s10 = sld [smem:[#allocation0]]
  $region66: #{tpu_custom_call.1} parent=0
    _
  %s12 = ssub.s32 1, %s10
  %s13 = scalar_select 0, %s12, %s10
  $region1: #{tpu_custom_call.1} parent=0
    #allocation2 [shape = 'u8[2048]{0}', space=vmem, size = 0x800, scoped, tag = 'input window, operand 0, single buffered']
    #allocation3 [shape = 's32[1]{0}', space=sflag, size = 0x4, scoped, tag = 'scoped memory for tpu_custom_call.1']
    #allocation4 [shape = 's32[1]{0}', space=sflag, size = 0x4, scoped, tag = 'scoped memory for tpu_custom_call.1']
    #allocation5 [shape = 'u8[8192]{0}', space=vmem, size = 0x2000, scoped, tag = 'input window, operand 1, single buffered']
    #allocation6 [shape = 's32[1]{0}', space=sflag, size = 0x4, scoped, tag = 'scoped memory for tpu_custom_call.1']
    #allocation7 [shape = 'u8[32768]{0}', space=vmem, size = 0x8000, scoped, tag = 'input window, operand 3, single buffered']
    #allocation8 [shape = 'u8[65536]{0}', space=vmem, size = 0x10000, scoped, tag = 'input window, operand 5, single buffered']
    #allocation9 [shape = 's32[1]{0}', space=sflag, size = 0x4, scoped, tag = 'scoped memory for tpu_custom_call.1']
    #allocation10 [shape = 'u8[393216]{0}', space=vmem, size = 0x60000, scoped, tag = 'input window, operand 7, single buffered']
    #allocation11 [shape = 'u8[12288]{0}', space=vmem, size = 0x3000, scoped, tag = 'output window, operand 0, single buffered']
    %14 = vsyncpa [#allocation3], 0
    %15 = vsyncpa [#allocation6], 0
    %16 = vsyncpa [#allocation9], 0
    %17 = vsyncpa [#allocation4], 0
    // Predicated region
    $region2: #{tpu_custom_call.1} parent=1 // pred_check
      _
    $region3: #{tpu_custom_call.1} parent=1 // pred_check_branch
      %19 = sbr.rel (0) target = $region5
    $region4: #{tpu_custom_call.1} parent=1 // pred_region
      %s21 = ssub.s32 64, 64
      %22 = vsyncadd [#allocation3], %s21
      %s24 = sshll.u32 [#allocation2], 4
      %s25 = int_to_ptr.vmem [resolvable:$true] %s24
      %27 = dma.hbm_to_vmem [thread:$0]  %s0, 64, %s25, [#allocation3]
    $region5: #{tpu_custom_call.1} parent=1 // pred_fallthru
      _
    // Predicated region
    $region6: #{tpu_custom_call.1} parent=1 // pred_check
      _
    $region7: #{tpu_custom_call.1} parent=1 // pred_check_branch
      %29 = sbr.rel (0) target = $region9
    $region8: #{tpu_custom_call.1} parent=1 // pred_region
      %s31 = ssub.s32 256, 256
      %32 = vsyncadd [#allocation6], %s31
      %s33 = sshll.u32 [#allocation5], 4
      %s34 = int_to_ptr.vmem [resolvable:$true] %s33
      %39 = dma.hbm_to_vmem [thread:$0]  %s1, 256, %s34, [#allocation6], 64, 64, 4
    $region9: #{tpu_custom_call.1} parent=1 // pred_fallthru
      _
    // Predicated region
    $region10: #{tpu_custom_call.1} parent=1 // pred_check
      _
    $region11: #{tpu_custom_call.1} parent=1 // pred_check_branch
      %41 = sbr.rel (0) target = $region13
    $region12: #{tpu_custom_call.1} parent=1 // pred_region
      _
    $region13: #{tpu_custom_call.1} parent=1 // pred_fallthru
      _
    // Predicated region
    $region14: #{tpu_custom_call.1} parent=1 // pred_check
      _
    $region15: #{tpu_custom_call.1} parent=1 // pred_check_branch
      %43 = sbr.rel (0) target = $region17
    $region16: #{tpu_custom_call.1} parent=1 // pred_region
      %s45 = ssub.s32 1024, 1024
      %46 = vsyncadd [#allocation6], %s45
      %s47 = sshll.u32 [#allocation7], 4
      %s48 = int_to_ptr.vmem [resolvable:$true] %s47
      %53 = dma.hbm_to_vmem [thread:$0]  %s3, 1024, %s48, [#allocation6], 64, 64, 4
    $region17: #{tpu_custom_call.1} parent=1 // pred_fallthru
      _
    // Predicated region
    $region18: #{tpu_custom_call.1} parent=1 // pred_check
      _
    $region19: #{tpu_custom_call.1} parent=1 // pred_check_branch
      %55 = sbr.rel (0) target = $region21
    $region20: #{tpu_custom_call.1} parent=1 // pred_region
      _
    $region21: #{tpu_custom_call.1} parent=1 // pred_fallthru
      _
    // Predicated region
    $region22: #{tpu_custom_call.1} parent=1 // pred_check
      _
    $region23: #{tpu_custom_call.1} parent=1 // pred_check_branch
      %57 = sbr.rel (0) target = $region25
    $region24: #{tpu_custom_call.1} parent=1 // pred_region
      %s59 = ssub.s32 2048, 2048
      %60 = vsyncadd [#allocation9], %s59
      %s61 = sshll.u32 [#allocation8], 4
      %s62 = int_to_ptr.vmem [resolvable:$true] %s61
      %67 = dma.hbm_to_vmem [thread:$0]  %s5, 2048, %s62, [#allocation9], 128, 128, 8
    $region25: #{tpu_custom_call.1} parent=1 // pred_fallthru
      _
    // Predicated region
    $region26: #{tpu_custom_call.1} parent=1 // pred_check
      _
    $region27: #{tpu_custom_call.1} parent=1 // pred_check_branch
      %69 = sbr.rel (0) target = $region29
    $region28: #{tpu_custom_call.1} parent=1 // pred_region
      _
    $region29: #{tpu_custom_call.1} parent=1 // pred_fallthru
      _
    // Predicated region
    $region30: #{tpu_custom_call.1} parent=1 // pred_check
      _
    $region31: #{tpu_custom_call.1} parent=1 // pred_check_branch
      %71 = sbr.rel (0) target = $region33
    $region32: #{tpu_custom_call.1} parent=1 // pred_region
      %s73 = ssub.s32 12288, 12288
      %74 = vsyncadd [#allocation9], %s73
      %s75 = sshll.u32 [#allocation10], 4
      %s76 = int_to_ptr.vmem [resolvable:$true] %s75
      %81 = dma.hbm_to_vmem [thread:$0]  %s7, 12288, %s76, [#allocation9], 384, 384, 24
    $region33: #{tpu_custom_call.1} parent=1 // pred_fallthru
      _
    // Predicated region
    $region34: #{tpu_custom_call.1} parent=1 // pred_check
      _
    $region35: #{tpu_custom_call.1} parent=1 // pred_check_branch
      %83 = sbr.rel (0) target = $region37
    $region36: #{tpu_custom_call.1} parent=1 // pred_region
      _
    $region37: #{tpu_custom_call.1} parent=1 // pred_fallthru
      _
    // Predicated region
    $region38: #{tpu_custom_call.1} parent=1 // pred_check
      _
    $region39: #{tpu_custom_call.1} parent=1 // pred_check_branch
      %85 = sbr.rel (0) target = $region41
    $region40: #{tpu_custom_call.1} parent=1 // pred_region
      %86 = dma.done [#allocation3], 64
    $region41: #{tpu_custom_call.1} parent=1 // pred_fallthru
      _
    // Predicated region
    $region42: #{tpu_custom_call.1} parent=1 // pred_check
      _
    $region43: #{tpu_custom_call.1} parent=1 // pred_check_branch
      %88 = sbr.rel (0) target = $region45
    $region44: #{tpu_custom_call.1} parent=1 // pred_region
      %89 = dma.done [#allocation6], 256
    $region45: #{tpu_custom_call.1} parent=1 // pred_fallthru
      _
    // Predicated region
    $region46: #{tpu_custom_call.1} parent=1 // pred_check
      _
    $region47: #{tpu_custom_call.1} parent=1 // pred_check_branch
      %91 = sbr.rel (0) target = $region49
    $region48: #{tpu_custom_call.1} parent=1 // pred_region
      %92 = dma.done [#allocation6], 1024
    $region49: #{tpu_custom_call.1} parent=1 // pred_fallthru
      _
    // Predicated region
    $region50: #{tpu_custom_call.1} parent=1 // pred_check
      _
    $region51: #{tpu_custom_call.1} parent=1 // pred_check_branch
      %94 = sbr.rel (0) target = $region53
    $region52: #{tpu_custom_call.1} parent=1 // pred_region
      %95 = dma.done [#allocation9], 2048
    $region53: #{tpu_custom_call.1} parent=1 // pred_fallthru
      _
    // Predicated region
    $region54: #{tpu_custom_call.1} parent=1 // pred_check
      _
    $region55: #{tpu_custom_call.1} parent=1 // pred_check_branch
      %97 = sbr.rel (0) target = $region57
    $region56: #{tpu_custom_call.1} parent=1 // pred_region
      %98 = dma.done [#allocation9], 12288
    $region57: #{tpu_custom_call.1} parent=1 // pred_fallthru
      _
    %v100 = vld [vmem:[#allocation2] sm:$0xf]
    %v101 = vld [vmem:[#allocation5] sm:$0xf]
    %v102 = vld [vmem:[#allocation5 + $0x4] sm:$0xf]
    %v103 = vld [vmem:[#allocation5 + $0x8] sm:$0xf]
    %v104 = vld [vmem:[#allocation5 + $0xc] sm:$0xf]
    %v105 = vld [vmem:[%s2] sm:$0x1]
    %v106 = vpack.c.bf16 %v100, %v100
    %v108 = vlaneseq
    %v109 = vshrl.u32 %v108, 7
    %v110 = vsub.s32 0, %v109
    %v111 = vrot.slane %v105, %v110
    %v117 = vunpack.c.l.b16 %v101
    %v118 = vunpack.c.l.b16 %v102
    %v119 = vunpack.c.l.b16 %v103
    %v120 = vunpack.c.l.b16 %v104
    %v121 = vpack.c.b16 %v118, %v117
    %v122 = vpack.c.b16 %v120, %v119
    %vm125 = vcmask 261120
    %v127 = vsel %vm125, %v106, 0
    %129 = vmatprep.subr.bf16.mxu0 0
    %130 = vmatpush1.bf16.msra.mxu0 %v121
    %131 = vmatprep.subr.bf16.mxu0 0
    %132 = vmatpush1.bf16.msra.mxu0 %v122
    %133 = vmatprep.subr.bf16.mxu0 0
    %134 = vmatpush1.bf16.msra.mxu0 0
    %135 = vmatprep.subr.bf16.mxu0 0
    %136 = vmatpush1.bf16.msra.mxu0 0
    %137 = vmatprep.subr.bf16.mxu0 0
    %138 = vmatpush1.bf16.msra.mxu0 0
    %139 = vmatprep.subr.bf16.mxu0 0
    %140 = vmatpush1.bf16.msra.mxu0 0
    %141 = vmatprep.subr.bf16.mxu0 0
    %142 = vmatpush1.bf16.msra.mxu0 0
    %143 = vmatprep.subr.bf16.mxu0 0
    %144 = vmatpush1.bf16.msra.mxu0 0
    %145 = vmatprep.subr.bf16.mxu0 0
    %146 = vmatpush1.bf16.msra.mxu0 0
    %147 = vmatprep.subr.bf16.mxu0 0
    %148 = vmatpush1.bf16.msra.mxu0 0
    %149 = vmatprep.subr.bf16.mxu0 0
    %150 = vmatpush1.bf16.msra.mxu0 0
    %151 = vmatprep.subr.bf16.mxu0 0
    %152 = vmatpush1.bf16.msra.mxu0 0
    %153 = vmatprep.subr.bf16.mxu0 0
    %154 = vmatpush1.bf16.msra.mxu0 0
    %155 = vmatprep.subr.bf16.mxu0 0
    %156 = vmatpush1.bf16.msra.mxu0 0
    %157 = vmatprep.subr.bf16.mxu0 0
    %158 = vmatpush1.bf16.msra.mxu0 0
    %159 = vmatprep.subr.bf16.mxu0 0
    %160 = vmatpush1.bf16.msra.mxu0 0
    %161 = vmatprep.mubr.bf16.mxu0 0
    %162 = vmatmul.mubr.bf16.gmra.mrb[0].mxu0 %v127
    %v163 = vpop.f32.mrb[0].mxu0
    %v164 = vadd.f32 %v111, %v163
    %v165 = vpop.f32.mrb[0].mxu0
    %v166 = vpop.f32.mrb[0].mxu0
    %v167 = vpop.f32.mrb[0].mxu0
    %168 = vdwg.mxu0
    %v169 = vmax.f32 %v164, 0.0
    %v170 = vld [vmem:[#allocation7] sm:$0xf]
    %v171 = vld [vmem:[#allocation7 + $0x4] sm:$0xf]
    %v172 = vld [vmem:[#allocation7 + $0x8] sm:$0xf]
    %v173 = vld [vmem:[#allocation7 + $0xc] sm:$0xf]
    %v174 = vld [vmem:[#allocation7 + $0x10] sm:$0xf]
    %v175 = vld [vmem:[#allocation7 + $0x14] sm:$0xf]
    %v176 = vld [vmem:[#allocation7 + $0x18] sm:$0xf]
    %v177 = vld [vmem:[#allocation7 + $0x1c] sm:$0xf]
    %v178 = vld [vmem:[#allocation7 + $0x20] sm:$0xf]
    %v179 = vld [vmem:[#allocation7 + $0x24] sm:$0xf]
    %v180 = vld [vmem:[#allocation7 + $0x28] sm:$0xf]
    %v181 = vld [vmem:[#allocation7 + $0x2c] sm:$0xf]
    %v182 = vld [vmem:[#allocation7 + $0x30] sm:$0xf]
    %v183 = vld [vmem:[#allocation7 + $0x34] sm:$0xf]
    %v184 = vld [vmem:[#allocation7 + $0x38] sm:$0xf]
    %v185 = vld [vmem:[#allocation7 + $0x3c] sm:$0xf]
    %v186 = vld [vmem:[%s4] sm:$0x1]
    %v187 = vpack.c.bf16 %v169, %v169
    %v189 = vlaneseq
    %v190 = vshrl.u32 %v189, 7
    %v191 = vsub.s32 0, %v190
    %v192 = vrot.slane %v186, %v191
    %v210 = vunpack.c.l.b16 %v170
    %v211 = vunpack.c.l.b16 %v171
    %v212 = vunpack.c.l.b16 %v172
    %v213 = vunpack.c.l.b16 %v173
    %v214 = vunpack.c.l.b16 %v174
    %v215 = vunpack.c.l.b16 %v175
    %v216 = vunpack.c.l.b16 %v176
    %v217 = vunpack.c.l.b16 %v177
    %v218 = vunpack.c.l.b16 %v178
    %v219 = vunpack.c.l.b16 %v179
    %v220 = vunpack.c.l.b16 %v180
    %v221 = vunpack.c.l.b16 %v181
    %v222 = vunpack.c.l.b16 %v182
    %v223 = vunpack.c.l.b16 %v183
    %v224 = vunpack.c.l.b16 %v184
    %v225 = vunpack.c.l.b16 %v185
    %v226 = vpack.c.b16 %v211, %v210
    %v227 = vpack.c.b16 %v213, %v212
    %v228 = vpack.c.b16 %v215, %v214
    %v229 = vpack.c.b16 %v217, %v216
    %v230 = vpack.c.b16 %v219, %v218
    %v231 = vpack.c.b16 %v221, %v220
    %v232 = vpack.c.b16 %v223, %v222
    %v233 = vpack.c.b16 %v225, %v224
    %242 = vmatprep.subr.bf16.mxu0 0
    %243 = vmatpush1.bf16.msra.mxu0 %v226
    %244 = vmatprep.subr.bf16.mxu0 0
    %245 = vmatpush1.bf16.msra.mxu0 %v227
    %246 = vmatprep.subr.bf16.mxu0 0
    %247 = vmatpush1.bf16.msra.mxu0 %v228
    %248 = vmatprep.subr.bf16.mxu0 0
    %249 = vmatpush1.bf16.msra.mxu0 %v229
    %250 = vmatprep.subr.bf16.mxu0 0
    %251 = vmatpush1.bf16.msra.mxu0 %v230
    %252 = vmatprep.subr.bf16.mxu0 0
    %253 = vmatpush1.bf16.msra.mxu0 %v231
    %254 = vmatprep.subr.bf16.mxu0 0
    %255 = vmatpush1.bf16.msra.mxu0 %v232
    %256 = vmatprep.subr.bf16.mxu0 0
    %257 = vmatpush1.bf16.msra.mxu0 %v233
    %258 = vmatprep.subr.bf16.mxu0 0
    %259 = vmatpush1.bf16.msra.mxu0 0
    %260 = vmatprep.subr.bf16.mxu0 0
    %261 = vmatpush1.bf16.msra.mxu0 0
    %262 = vmatprep.subr.bf16.mxu0 0
    %263 = vmatpush1.bf16.msra.mxu0 0
    %264 = vmatprep.subr.bf16.mxu0 0
    %265 = vmatpush1.bf16.msra.mxu0 0
    %266 = vmatprep.subr.bf16.mxu0 0
    %267 = vmatpush1.bf16.msra.mxu0 0
    %268 = vmatprep.subr.bf16.mxu0 0
    %269 = vmatpush1.bf16.msra.mxu0 0
    %270 = vmatprep.subr.bf16.mxu0 0
    %271 = vmatpush1.bf16.msra.mxu0 0
    %272 = vmatprep.subr.bf16.mxu0 0
    %273 = vmatpush1.bf16.msra.mxu0 0
    %274 = vmatprep.mubr.bf16.mxu0 0
    %275 = vmatmul.mubr.bf16.gmra.mrb[0].mxu0 %v187
    %v276 = vpop.f32.mrb[0].mxu0
    %v277 = vadd.f32 %v192, %v276
    %v278 = vpop.f32.mrb[0].mxu0
    %v279 = vpop.f32.mrb[0].mxu0
    %v280 = vpop.f32.mrb[0].mxu0
    %281 = vdwg.mxu0
    %v282 = vmax.f32 %v277, 0.0
    %v283 = vld [vmem:[#allocation8] sm:$0xff]
    %v284 = vld [vmem:[#allocation8 + $0x8] sm:$0xff]
    %v285 = vld [vmem:[#allocation8 + $0x10] sm:$0xff]
    %v286 = vld [vmem:[#allocation8 + $0x18] sm:$0xff]
    %v287 = vld [vmem:[#allocation8 + $0x20] sm:$0xff]
    %v288 = vld [vmem:[#allocation8 + $0x28] sm:$0xff]
    %v289 = vld [vmem:[#allocation8 + $0x30] sm:$0xff]
    %v290 = vld [vmem:[#allocation8 + $0x38] sm:$0xff]
    %v291 = vld [vmem:[#allocation8 + $0x40] sm:$0xff]
    %v292 = vld [vmem:[#allocation8 + $0x48] sm:$0xff]
    %v293 = vld [vmem:[#allocation8 + $0x50] sm:$0xff]
    %v294 = vld [vmem:[#allocation8 + $0x58] sm:$0xff]
    %v295 = vld [vmem:[#allocation8 + $0x60] sm:$0xff]
    %v296 = vld [vmem:[#allocation8 + $0x68] sm:$0xff]
    %v297 = vld [vmem:[#allocation8 + $0x70] sm:$0xff]
    %v298 = vld [vmem:[#allocation8 + $0x78] sm:$0xff]
    %v299 = vld [vmem:[%s6] sm:$0x3]
    %v300 = vpack.c.bf16 %v282, %v282
    %v302 = vlaneseq
    %v303 = vshrl.u32 %v302, 7
    %v304 = vsub.s32 0, %v303
    %v305 = vrot.slane %v299, %v304
    %v306 = vlaneseq
    %v307 = vshrl.u32 %v306, 7
    %v308 = vsub.s32 1, %v307
    %v309 = vrot.slane %v299, %v308
    %v328 = vunpack.c.l.b16 %v283
    %v329 = vunpack.c.h.b16 %v283
    %v330 = vunpack.c.l.b16 %v284
    %v331 = vunpack.c.h.b16 %v284
    %v332 = vunpack.c.l.b16 %v285
    %v333 = vunpack.c.h.b16 %v285
    %v334 = vunpack.c.l.b16 %v286
    %v335 = vunpack.c.h.b16 %v286
    %v336 = vunpack.c.l.b16 %v287
    %v337 = vunpack.c.h.b16 %v287
    %v338 = vunpack.c.l.b16 %v288
    %v339 = vunpack.c.h.b16 %v288
    %v340 = vunpack.c.l.b16 %v289
    %v341 = vunpack.c.h.b16 %v289
    %v342 = vunpack.c.l.b16 %v290
    %v343 = vunpack.c.h.b16 %v290
    %v344 = vunpack.c.l.b16 %v291
    %v345 = vunpack.c.h.b16 %v291
    %v346 = vunpack.c.l.b16 %v292
    %v347 = vunpack.c.h.b16 %v292
    %v348 = vunpack.c.l.b16 %v293
    %v349 = vunpack.c.h.b16 %v293
    %v350 = vunpack.c.l.b16 %v294
    %v351 = vunpack.c.h.b16 %v294
    %v352 = vunpack.c.l.b16 %v295
    %v353 = vunpack.c.h.b16 %v295
    %v354 = vunpack.c.l.b16 %v296
    %v355 = vunpack.c.h.b16 %v296
    %v356 = vunpack.c.l.b16 %v297
    %v357 = vunpack.c.h.b16 %v297
    %v358 = vunpack.c.l.b16 %v298
    %v359 = vunpack.c.h.b16 %v298
    %v360 = vpack.c.b16 %v330, %v328
    %v361 = vpack.c.b16 %v331, %v329
    %v362 = vpack.c.b16 %v334, %v332
    %v363 = vpack.c.b16 %v335, %v333
    %v364 = vpack.c.b16 %v338, %v336
    %v365 = vpack.c.b16 %v339, %v337
    %v366 = vpack.c.b16 %v342, %v340
    %v367 = vpack.c.b16 %v343, %v341
    %v368 = vpack.c.b16 %v346, %v344
    %v369 = vpack.c.b16 %v347, %v345
    %v370 = vpack.c.b16 %v350, %v348
    %v371 = vpack.c.b16 %v351, %v349
    %v372 = vpack.c.b16 %v354, %v352
    %v373 = vpack.c.b16 %v355, %v353
    %v374 = vpack.c.b16 %v358, %v356
    %v375 = vpack.c.b16 %v359, %v357
    %392 = vmatprep.subr.bf16.mxu0 %v361
    %393 = vmatpush1.bf16.msra.mxu0 %v360
    %394 = vmatprep.subr.bf16.mxu0 %v363
    %395 = vmatpush1.bf16.msra.mxu0 %v362
    %396 = vmatprep.subr.bf16.mxu0 %v365
    %397 = vmatpush1.bf16.msra.mxu0 %v364
    %398 = vmatprep.subr.bf16.mxu0 %v367
    %399 = vmatpush1.bf16.msra.mxu0 %v366
    %400 = vmatprep.subr.bf16.mxu0 %v369
    %401 = vmatpush1.bf16.msra.mxu0 %v368
    %402 = vmatprep.subr.bf16.mxu0 %v371
    %403 = vmatpush1.bf16.msra.mxu0 %v370
    %404 = vmatprep.subr.bf16.mxu0 %v373
    %405 = vmatpush1.bf16.msra.mxu0 %v372
    %406 = vmatprep.subr.bf16.mxu0 %v375
    %407 = vmatpush1.bf16.msra.mxu0 %v374
    %408 = vmatprep.subr.bf16.mxu0 0
    %409 = vmatpush1.bf16.msra.mxu0 0
    %410 = vmatprep.subr.bf16.mxu0 0
    %411 = vmatpush1.bf16.msra.mxu0 0
    %412 = vmatprep.subr.bf16.mxu0 0
    %413 = vmatpush1.bf16.msra.mxu0 0
    %414 = vmatprep.subr.bf16.mxu0 0
    %415 = vmatpush1.bf16.msra.mxu0 0
    %416 = vmatprep.subr.bf16.mxu0 0
    %417 = vmatpush1.bf16.msra.mxu0 0
    %418 = vmatprep.subr.bf16.mxu0 0
    %419 = vmatpush1.bf16.msra.mxu0 0
    %420 = vmatprep.subr.bf16.mxu0 0
    %421 = vmatpush1.bf16.msra.mxu0 0
    %422 = vmatprep.subr.bf16.mxu0 0
    %423 = vmatpush1.bf16.msra.mxu0 0
    %424 = vmatprep.mubr.bf16.mxu0 0
    %425 = vmatmul.mubr.bf16.gmra.mrb[0].mxu0 %v300
    %v426 = vpop.f32.mrb[0].mxu0
    %v427 = vadd.f32 %v305, %v426
    %v428 = vpop.f32.mrb[0].mxu0
    %v429 = vadd.f32 %v309, %v428
    %v430 = vpop.f32.mrb[0].mxu0
    %v431 = vpop.f32.mrb[0].mxu0
    %432 = vdwg.mxu0
    %v433 = vmax.f32 %v427, 0.0
    %v434 = vmax.f32 %v429, 0.0
    %v435 = vld [vmem:[#allocation10] sm:$0xff]
    %v436 = vld [vmem:[#allocation10 + $0x8] sm:$0xff]
    %v437 = vld [vmem:[#allocation10 + $0x10] sm:$0xff]
    %v438 = vld [vmem:[#allocation10 + $0x18] sm:$0xff]
    %v439 = vld [vmem:[#allocation10 + $0x20] sm:$0xff]
    %v440 = vld [vmem:[#allocation10 + $0x28] sm:$0xff]
    %v441 = vld [vmem:[#allocation10 + $0x30] sm:$0xff]
    %v442 = vld [vmem:[#allocation10 + $0x38] sm:$0xff]
    %v443 = vld [vmem:[#allocation10 + $0x40] sm:$0xff]
    %v444 = vld [vmem:[#allocation10 + $0x48] sm:$0xff]
    %v445 = vld [vmem:[#allocation10 + $0x50] sm:$0xff]
    %v446 = vld [vmem:[#allocation10 + $0x58] sm:$0xff]
    %v447 = vld [vmem:[#allocation10 + $0x60] sm:$0xff]
    %v448 = vld [vmem:[#allocation10 + $0x68] sm:$0xff]
    %v449 = vld [vmem:[#allocation10 + $0x70] sm:$0xff]
    %v450 = vld [vmem:[#allocation10 + $0x78] sm:$0xff]
    %v451 = vld [vmem:[#allocation10 + $0x80] sm:$0xff]
    %v452 = vld [vmem:[#allocation10 + $0x88] sm:$0xff]
    %v453 = vld [vmem:[#allocation10 + $0x90] sm:$0xff]
    %v454 = vld [vmem:[#allocation10 + $0x98] sm:$0xff]
    %v455 = vld [vmem:[#allocation10 + $0xa0] sm:$0xff]
    %v456 = vld [vmem:[#allocation10 + $0xa8] sm:$0xff]
    %v457 = vld [vmem:[#allocation10 + $0xb0] sm:$0xff]
    %v458 = vld [vmem:[#allocation10 + $0xb8] sm:$0xff]
    %v459 = vld [vmem:[#allocation10 + $0xc0] sm:$0xff]
    %v460 = vld [vmem:[#allocation10 + $0xc8] sm:$0xff]
    %v461 = vld [vmem:[#allocation10 + $0xd0] sm:$0xff]
    %v462 = vld [vmem:[#allocation10 + $0xd8] sm:$0xff]
    %v463 = vld [vmem:[#allocation10 + $0xe0] sm:$0xff]
    %v464 = vld [vmem:[#allocation10 + $0xe8] sm:$0xff]
    %v465 = vld [vmem:[#allocation10 + $0xf0] sm:$0xff]
    %v466 = vld [vmem:[#allocation10 + $0xf8] sm:$0xff]
    %v467 = vld [vmem:[#allocation10 + $0x100] sm:$0xff]
    %v468 = vld [vmem:[#allocation10 + $0x108] sm:$0xff]
    %v469 = vld [vmem:[#allocation10 + $0x110] sm:$0xff]
    %v470 = vld [vmem:[#allocation10 + $0x118] sm:$0xff]
    %v471 = vld [vmem:[#allocation10 + $0x120] sm:$0xff]
    %v472 = vld [vmem:[#allocation10 + $0x128] sm:$0xff]
    %v473 = vld [vmem:[#allocation10 + $0x130] sm:$0xff]
    %v474 = vld [vmem:[#allocation10 + $0x138] sm:$0xff]
    %v475 = vld [vmem:[#allocation10 + $0x140] sm:$0xff]
    %v476 = vld [vmem:[#allocation10 + $0x148] sm:$0xff]
    %v477 = vld [vmem:[#allocation10 + $0x150] sm:$0xff]
    %v478 = vld [vmem:[#allocation10 + $0x158] sm:$0xff]
    %v479 = vld [vmem:[#allocation10 + $0x160] sm:$0xff]
    %v480 = vld [vmem:[#allocation10 + $0x168] sm:$0xff]
    %v481 = vld [vmem:[#allocation10 + $0x170] sm:$0xff]
    %v482 = vld [vmem:[#allocation10 + $0x178] sm:$0xff]
    %v483 = vld [vmem:[#allocation10 + $0x180] sm:$0xff]
    %v484 = vld [vmem:[#allocation10 + $0x188] sm:$0xff]
    %v485 = vld [vmem:[#allocation10 + $0x190] sm:$0xff]
    %v486 = vld [vmem:[#allocation10 + $0x198] sm:$0xff]
    %v487 = vld [vmem:[#allocation10 + $0x1a0] sm:$0xff]
    %v488 = vld [vmem:[#allocation10 + $0x1a8] sm:$0xff]
    %v489 = vld [vmem:[#allocation10 + $0x1b0] sm:$0xff]
    %v490 = vld [vmem:[#allocation10 + $0x1b8] sm:$0xff]
    %v491 = vld [vmem:[#allocation10 + $0x1c0] sm:$0xff]
    %v492 = vld [vmem:[#allocation10 + $0x1c8] sm:$0xff]
    %v493 = vld [vmem:[#allocation10 + $0x1d0] sm:$0xff]
    %v494 = vld [vmem:[#allocation10 + $0x1d8] sm:$0xff]
    %v495 = vld [vmem:[#allocation10 + $0x1e0] sm:$0xff]
    %v496 = vld [vmem:[#allocation10 + $0x1e8] sm:$0xff]
    %v497 = vld [vmem:[#allocation10 + $0x1f0] sm:$0xff]
    %v498 = vld [vmem:[#allocation10 + $0x1f8] sm:$0xff]
    %v499 = vld [vmem:[#allocation10 + $0x200] sm:$0xff]
    %v500 = vld [vmem:[#allocation10 + $0x208] sm:$0xff]
    %v501 = vld [vmem:[#allocation10 + $0x210] sm:$0xff]
    %v502 = vld [vmem:[#allocation10 + $0x218] sm:$0xff]
    %v503 = vld [vmem:[#allocation10 + $0x220] sm:$0xff]
    %v504 = vld [vmem:[#allocation10 + $0x228] sm:$0xff]
    %v505 = vld [vmem:[#allocation10 + $0x230] sm:$0xff]
    %v506 = vld [vmem:[#allocation10 + $0x238] sm:$0xff]
    %v507 = vld [vmem:[#allocation10 + $0x240] sm:$0xff]
    %v508 = vld [vmem:[#allocation10 + $0x248] sm:$0xff]
    %v509 = vld [vmem:[#allocation10 + $0x250] sm:$0xff]
    %v510 = vld [vmem:[#allocation10 + $0x258] sm:$0xff]
    %v511 = vld [vmem:[#allocation10 + $0x260] sm:$0xff]
    %v512 = vld [vmem:[#allocation10 + $0x268] sm:$0xff]
    %v513 = vld [vmem:[#allocation10 + $0x270] sm:$0xff]
    %v514 = vld [vmem:[#allocation10 + $0x278] sm:$0xff]
    %v515 = vld [vmem:[#allocation10 + $0x280] sm:$0xff]
    %v516 = vld [vmem:[#allocation10 + $0x288] sm:$0xff]
    %v517 = vld [vmem:[#allocation10 + $0x290] sm:$0xff]
    %v518 = vld [vmem:[#allocation10 + $0x298] sm:$0xff]
    %v519 = vld [vmem:[#allocation10 + $0x2a0] sm:$0xff]
    %v520 = vld [vmem:[#allocation10 + $0x2a8] sm:$0xff]
    %v521 = vld [vmem:[#allocation10 + $0x2b0] sm:$0xff]
    %v522 = vld [vmem:[#allocation10 + $0x2b8] sm:$0xff]
    %v523 = vld [vmem:[#allocation10 + $0x2c0] sm:$0xff]
    %v524 = vld [vmem:[#allocation10 + $0x2c8] sm:$0xff]
    %v525 = vld [vmem:[#allocation10 + $0x2d0] sm:$0xff]
    %v526 = vld [vmem:[#allocation10 + $0x2d8] sm:$0xff]
    %v527 = vld [vmem:[#allocation10 + $0x2e0] sm:$0xff]
    %v528 = vld [vmem:[#allocation10 + $0x2e8] sm:$0xff]
    %v529 = vld [vmem:[#allocation10 + $0x2f0] sm:$0xff]
    %v530 = vld [vmem:[#allocation10 + $0x2f8] sm:$0xff]
    %v531 = vld [vmem:[%s8] sm:$0x3f]
    %v532 = vpack.c.bf16 %v433, %v433
    %v533 = vpack.c.bf16 %v434, %v434
    %v535 = vlaneseq
    %v536 = vshrl.u32 %v535, 7
    %v537 = vsub.s32 0, %v536
    %v538 = vrot.slane %v531, %v537
    %v539 = vlaneseq
    %v540 = vshrl.u32 %v539, 7
    %v541 = vsub.s32 1, %v540
    %v542 = vrot.slane %v531, %v541
    %v543 = vlaneseq
    %v544 = vshrl.u32 %v543, 7
    %v545 = vsub.s32 2, %v544
    %v546 = vrot.slane %v531, %v545
    %v547 = vlaneseq
    %v548 = vshrl.u32 %v547, 7
    %v549 = vsub.s32 3, %v548
    %v550 = vrot.slane %v531, %v549
    %v551 = vlaneseq
    %v552 = vshrl.u32 %v551, 7
    %v553 = vsub.s32 4, %v552
    %v554 = vrot.slane %v531, %v553
    %v555 = vlaneseq
    %v556 = vshrl.u32 %v555, 7
    %v557 = vsub.s32 5, %v556
    %v558 = vrot.slane %v531, %v557
    %v661 = vunpack.c.l.b16 %v435
    %v662 = vunpack.c.h.b16 %v435
    %v663 = vunpack.c.l.b16 %v436
    %v664 = vunpack.c.h.b16 %v436
    %v665 = vunpack.c.l.b16 %v437
    %v666 = vunpack.c.h.b16 %v437
    %v667 = vunpack.c.l.b16 %v438
    %v668 = vunpack.c.h.b16 %v438
    %v669 = vunpack.c.l.b16 %v439
    %v670 = vunpack.c.h.b16 %v439
    %v671 = vunpack.c.l.b16 %v440
    %v672 = vunpack.c.h.b16 %v440
    %v673 = vunpack.c.l.b16 %v441
    %v674 = vunpack.c.h.b16 %v441
    %v675 = vunpack.c.l.b16 %v442
    %v676 = vunpack.c.h.b16 %v442
    %v677 = vunpack.c.l.b16 %v443
    %v678 = vunpack.c.h.b16 %v443
    %v679 = vunpack.c.l.b16 %v444
    %v680 = vunpack.c.h.b16 %v444
    %v681 = vunpack.c.l.b16 %v445
    %v682 = vunpack.c.h.b16 %v445
    %v683 = vunpack.c.l.b16 %v446
    %v684 = vunpack.c.h.b16 %v446
    %v685 = vunpack.c.l.b16 %v447
    %v686 = vunpack.c.h.b16 %v447
    %v687 = vunpack.c.l.b16 %v448
    %v688 = vunpack.c.h.b16 %v448
    %v689 = vunpack.c.l.b16 %v449
    %v690 = vunpack.c.h.b16 %v449
    %v691 = vunpack.c.l.b16 %v450
    %v692 = vunpack.c.h.b16 %v450
    %v693 = vunpack.c.l.b16 %v451
    %v694 = vunpack.c.h.b16 %v451
    %v695 = vunpack.c.l.b16 %v452
    %v696 = vunpack.c.h.b16 %v452
    %v697 = vunpack.c.l.b16 %v453
    %v698 = vunpack.c.h.b16 %v453
    %v699 = vunpack.c.l.b16 %v454
    %v700 = vunpack.c.h.b16 %v454
    %v701 = vunpack.c.l.b16 %v455
    %v702 = vunpack.c.h.b16 %v455
    %v703 = vunpack.c.l.b16 %v456
    %v704 = vunpack.c.h.b16 %v456
    %v705 = vunpack.c.l.b16 %v457
    %v706 = vunpack.c.h.b16 %v457
    %v707 = vunpack.c.l.b16 %v458
    %v708 = vunpack.c.h.b16 %v458
    %v709 = vunpack.c.l.b16 %v459
    %v710 = vunpack.c.h.b16 %v459
    %v711 = vunpack.c.l.b16 %v460
    %v712 = vunpack.c.h.b16 %v460
    %v713 = vunpack.c.l.b16 %v461
    %v714 = vunpack.c.h.b16 %v461
    %v715 = vunpack.c.l.b16 %v462
    %v716 = vunpack.c.h.b16 %v462
    %v717 = vunpack.c.l.b16 %v463
    %v718 = vunpack.c.h.b16 %v463
    %v719 = vunpack.c.l.b16 %v464
    %v720 = vunpack.c.h.b16 %v464
    %v721 = vunpack.c.l.b16 %v465
    %v722 = vunpack.c.h.b16 %v465
    %v723 = vunpack.c.l.b16 %v466
    %v724 = vunpack.c.h.b16 %v466
    %v725 = vunpack.c.l.b16 %v467
    %v726 = vunpack.c.h.b16 %v467
    %v727 = vunpack.c.l.b16 %v468
    %v728 = vunpack.c.h.b16 %v468
    %v729 = vunpack.c.l.b16 %v469
    %v730 = vunpack.c.h.b16 %v469
    %v731 = vunpack.c.l.b16 %v470
    %v732 = vunpack.c.h.b16 %v470
    %v733 = vunpack.c.l.b16 %v471
    %v734 = vunpack.c.h.b16 %v471
    %v735 = vunpack.c.l.b16 %v472
    %v736 = vunpack.c.h.b16 %v472
    %v737 = vunpack.c.l.b16 %v473
    %v738 = vunpack.c.h.b16 %v473
    %v739 = vunpack.c.l.b16 %v474
    %v740 = vunpack.c.h.b16 %v474
    %v741 = vunpack.c.l.b16 %v475
    %v742 = vunpack.c.h.b16 %v475
    %v743 = vunpack.c.l.b16 %v476
    %v744 = vunpack.c.h.b16 %v476
    %v745 = vunpack.c.l.b16 %v477
    %v746 = vunpack.c.h.b16 %v477
    %v747 = vunpack.c.l.b16 %v478
    %v748 = vunpack.c.h.b16 %v478
    %v749 = vunpack.c.l.b16 %v479
    %v750 = vunpack.c.h.b16 %v479
    %v751 = vunpack.c.l.b16 %v480
    %v752 = vunpack.c.h.b16 %v480
    %v753 = vunpack.c.l.b16 %v481
    %v754 = vunpack.c.h.b16 %v481
    %v755 = vunpack.c.l.b16 %v482
    %v756 = vunpack.c.h.b16 %v482
    %v757 = vunpack.c.l.b16 %v483
    %v758 = vunpack.c.h.b16 %v483
    %v759 = vunpack.c.l.b16 %v484
    %v760 = vunpack.c.h.b16 %v484
    %v761 = vunpack.c.l.b16 %v485
    %v762 = vunpack.c.h.b16 %v485
    %v763 = vunpack.c.l.b16 %v486
    %v764 = vunpack.c.h.b16 %v486
    %v765 = vunpack.c.l.b16 %v487
    %v766 = vunpack.c.h.b16 %v487
    %v767 = vunpack.c.l.b16 %v488
    %v768 = vunpack.c.h.b16 %v488
    %v769 = vunpack.c.l.b16 %v489
    %v770 = vunpack.c.h.b16 %v489
    %v771 = vunpack.c.l.b16 %v490
    %v772 = vunpack.c.h.b16 %v490
    %v773 = vunpack.c.l.b16 %v491
    %v774 = vunpack.c.h.b16 %v491
    %v775 = vunpack.c.l.b16 %v492
    %v776 = vunpack.c.h.b16 %v492
    %v777 = vunpack.c.l.b16 %v493
    %v778 = vunpack.c.h.b16 %v493
    %v779 = vunpack.c.l.b16 %v494
    %v780 = vunpack.c.h.b16 %v494
    %v781 = vunpack.c.l.b16 %v495
    %v782 = vunpack.c.h.b16 %v495
    %v783 = vunpack.c.l.b16 %v496
    %v784 = vunpack.c.h.b16 %v496
    %v785 = vunpack.c.l.b16 %v497
    %v786 = vunpack.c.h.b16 %v497
    %v787 = vunpack.c.l.b16 %v498
    %v788 = vunpack.c.h.b16 %v498
    %v789 = vunpack.c.l.b16 %v499
    %v790 = vunpack.c.h.b16 %v499
    %v791 = vunpack.c.l.b16 %v500
    %v792 = vunpack.c.h.b16 %v500
    %v793 = vunpack.c.l.b16 %v501
    %v794 = vunpack.c.h.b16 %v501
    %v795 = vunpack.c.l.b16 %v502
    %v796 = vunpack.c.h.b16 %v502
    %v797 = vunpack.c.l.b16 %v503
    %v798 = vunpack.c.h.b16 %v503
    %v799 = vunpack.c.l.b16 %v504
    %v800 = vunpack.c.h.b16 %v504
    %v801 = vunpack.c.l.b16 %v505
    %v802 = vunpack.c.h.b16 %v505
    %v803 = vunpack.c.l.b16 %v506
    %v804 = vunpack.c.h.b16 %v506
    %v805 = vunpack.c.l.b16 %v507
    %v806 = vunpack.c.h.b16 %v507
    %v807 = vunpack.c.l.b16 %v508
    %v808 = vunpack.c.h.b16 %v508
    %v809 = vunpack.c.l.b16 %v509
    %v810 = vunpack.c.h.b16 %v509
    %v811 = vunpack.c.l.b16 %v510
    %v812 = vunpack.c.h.b16 %v510
    %v813 = vunpack.c.l.b16 %v511
    %v814 = vunpack.c.h.b16 %v511
    %v815 = vunpack.c.l.b16 %v512
    %v816 = vunpack.c.h.b16 %v512
    %v817 = vunpack.c.l.b16 %v513
    %v818 = vunpack.c.h.b16 %v513
    %v819 = vunpack.c.l.b16 %v514
    %v820 = vunpack.c.h.b16 %v514
    %v821 = vunpack.c.l.b16 %v515
    %v822 = vunpack.c.h.b16 %v515
    %v823 = vunpack.c.l.b16 %v516
    %v824 = vunpack.c.h.b16 %v516
    %v825 = vunpack.c.l.b16 %v517
    %v826 = vunpack.c.h.b16 %v517
    %v827 = vunpack.c.l.b16 %v518
    %v828 = vunpack.c.h.b16 %v518
    %v829 = vunpack.c.l.b16 %v519
    %v830 = vunpack.c.h.b16 %v519
    %v831 = vunpack.c.l.b16 %v520
    %v832 = vunpack.c.h.b16 %v520
    %v833 = vunpack.c.l.b16 %v521
    %v834 = vunpack.c.h.b16 %v521
    %v835 = vunpack.c.l.b16 %v522
    %v836 = vunpack.c.h.b16 %v522
    %v837 = vunpack.c.l.b16 %v523
    %v838 = vunpack.c.h.b16 %v523
    %v839 = vunpack.c.l.b16 %v524
    %v840 = vunpack.c.h.b16 %v524
    %v841 = vunpack.c.l.b16 %v525
    %v842 = vunpack.c.h.b16 %v525
    %v843 = vunpack.c.l.b16 %v526
    %v844 = vunpack.c.h.b16 %v526
    %v845 = vunpack.c.l.b16 %v527
    %v846 = vunpack.c.h.b16 %v527
    %v847 = vunpack.c.l.b16 %v528
    %v848 = vunpack.c.h.b16 %v528
    %v849 = vunpack.c.l.b16 %v529
    %v850 = vunpack.c.h.b16 %v529
    %v851 = vunpack.c.l.b16 %v530
    %v852 = vunpack.c.h.b16 %v530
    %v853 = vpack.c.b16 %v667, %v661
    %v854 = vpack.c.b16 %v668, %v662
    %v855 = vpack.c.b16 %v669, %v663
    %v856 = vpack.c.b16 %v670, %v664
    %v857 = vpack.c.b16 %v671, %v665
    %v858 = vpack.c.b16 %v672, %v666
    %v859 = vpack.c.b16 %v679, %v673
    %v860 = vpack.c.b16 %v680, %v674
    %v861 = vpack.c.b16 %v681, %v675
    %v862 = vpack.c.b16 %v682, %v676
    %v863 = vpack.c.b16 %v683, %v677
    %v864 = vpack.c.b16 %v684, %v678
    %v865 = vpack.c.b16 %v691, %v685
    %v866 = vpack.c.b16 %v692, %v686
    %v867 = vpack.c.b16 %v693, %v687
    %v868 = vpack.c.b16 %v694, %v688
    %v869 = vpack.c.b16 %v695, %v689
    %v870 = vpack.c.b16 %v696, %v690
    %v871 = vpack.c.b16 %v703, %v697
    %v872 = vpack.c.b16 %v704, %v698
    %v873 = vpack.c.b16 %v705, %v699
    %v874 = vpack.c.b16 %v706, %v700
    %v875 = vpack.c.b16 %v707, %v701
    %v876 = vpack.c.b16 %v708, %v702
    %v877 = vpack.c.b16 %v715, %v709
    %v878 = vpack.c.b16 %v716, %v710
    %v879 = vpack.c.b16 %v717, %v711
    %v880 = vpack.c.b16 %v718, %v712
    %v881 = vpack.c.b16 %v719, %v713
    %v882 = vpack.c.b16 %v720, %v714
    %v883 = vpack.c.b16 %v727, %v721
    %v884 = vpack.c.b16 %v728, %v722
    %v885 = vpack.c.b16 %v729, %v723
    %v886 = vpack.c.b16 %v730, %v724
    %v887 = vpack.c.b16 %v731, %v725
    %v888 = vpack.c.b16 %v732, %v726
    %v889 = vpack.c.b16 %v739, %v733
    %v890 = vpack.c.b16 %v740, %v734
    %v891 = vpack.c.b16 %v741, %v735
    %v892 = vpack.c.b16 %v742, %v736
    %v893 = vpack.c.b16 %v743, %v737
    %v894 = vpack.c.b16 %v744, %v738
    %v895 = vpack.c.b16 %v751, %v745
    %v896 = vpack.c.b16 %v752, %v746
    %v897 = vpack.c.b16 %v753, %v747
    %v898 = vpack.c.b16 %v754, %v748
    %v899 = vpack.c.b16 %v755, %v749
    %v900 = vpack.c.b16 %v756, %v750
    %v901 = vpack.c.b16 %v763, %v757
    %v902 = vpack.c.b16 %v764, %v758
    %v903 = vpack.c.b16 %v765, %v759
    %v904 = vpack.c.b16 %v766, %v760
    %v905 = vpack.c.b16 %v767, %v761
    %v906 = vpack.c.b16 %v768, %v762
    %v907 = vpack.c.b16 %v775, %v769
    %v908 = vpack.c.b16 %v776, %v770
    %v909 = vpack.c.b16 %v777, %v771
    %v910 = vpack.c.b16 %v778, %v772
    %v911 = vpack.c.b16 %v779, %v773
    %v912 = vpack.c.b16 %v780, %v774
    %v913 = vpack.c.b16 %v787, %v781
    %v914 = vpack.c.b16 %v788, %v782
    %v915 = vpack.c.b16 %v789, %v783
    %v916 = vpack.c.b16 %v790, %v784
    %v917 = vpack.c.b16 %v791, %v785
    %v918 = vpack.c.b16 %v792, %v786
    %v919 = vpack.c.b16 %v799, %v793
    %v920 = vpack.c.b16 %v800, %v794
    %v921 = vpack.c.b16 %v801, %v795
    %v922 = vpack.c.b16 %v802, %v796
    %v923 = vpack.c.b16 %v803, %v797
    %v924 = vpack.c.b16 %v804, %v798
    %v925 = vpack.c.b16 %v811, %v805
    %v926 = vpack.c.b16 %v812, %v806
    %v927 = vpack.c.b16 %v813, %v807
    %v928 = vpack.c.b16 %v814, %v808
    %v929 = vpack.c.b16 %v815, %v809
    %v930 = vpack.c.b16 %v816, %v810
    %v931 = vpack.c.b16 %v823, %v817
    %v932 = vpack.c.b16 %v824, %v818
    %v933 = vpack.c.b16 %v825, %v819
    %v934 = vpack.c.b16 %v826, %v820
    %v935 = vpack.c.b16 %v827, %v821
    %v936 = vpack.c.b16 %v828, %v822
    %v937 = vpack.c.b16 %v835, %v829
    %v938 = vpack.c.b16 %v836, %v830
    %v939 = vpack.c.b16 %v837, %v831
    %v940 = vpack.c.b16 %v838, %v832
    %v941 = vpack.c.b16 %v839, %v833
    %v942 = vpack.c.b16 %v840, %v834
    %v943 = vpack.c.b16 %v847, %v841
    %v944 = vpack.c.b16 %v848, %v842
    %v945 = vpack.c.b16 %v849, %v843
    %v946 = vpack.c.b16 %v850, %v844
    %v947 = vpack.c.b16 %v851, %v845
    %v948 = vpack.c.b16 %v852, %v846
    %1045 = vmatprep.subr.bf16.mxu0 %v854
    %1046 = vmatpush1.bf16.msra.mxu0 %v853
    %1047 = vmatprep.subr.bf16.mxu0 %v860
    %1048 = vmatpush1.bf16.msra.mxu0 %v859
    %1049 = vmatprep.subr.bf16.mxu0 %v866
    %1050 = vmatpush1.bf16.msra.mxu0 %v865
    %1051 = vmatprep.subr.bf16.mxu0 %v872
    %1052 = vmatpush1.bf16.msra.mxu0 %v871
    %1053 = vmatprep.subr.bf16.mxu0 %v878
    %1054 = vmatpush1.bf16.msra.mxu0 %v877
    %1055 = vmatprep.subr.bf16.mxu0 %v884
    %1056 = vmatpush1.bf16.msra.mxu0 %v883
    %1057 = vmatprep.subr.bf16.mxu0 %v890
    %1058 = vmatpush1.bf16.msra.mxu0 %v889
    %1059 = vmatprep.subr.bf16.mxu0 %v896
    %1060 = vmatpush1.bf16.msra.mxu0 %v895
    %1061 = vmatprep.subr.bf16.mxu0 %v902
    %1062 = vmatpush1.bf16.msra.mxu0 %v901
    %1063 = vmatprep.subr.bf16.mxu0 %v908
    %1064 = vmatpush1.bf16.msra.mxu0 %v907
    %1065 = vmatprep.subr.bf16.mxu0 %v914
    %1066 = vmatpush1.bf16.msra.mxu0 %v913
    %1067 = vmatprep.subr.bf16.mxu0 %v920
    %1068 = vmatpush1.bf16.msra.mxu0 %v919
    %1069 = vmatprep.subr.bf16.mxu0 %v926
    %1070 = vmatpush1.bf16.msra.mxu0 %v925
    %1071 = vmatprep.subr.bf16.mxu0 %v932
    %1072 = vmatpush1.bf16.msra.mxu0 %v931
    %1073 = vmatprep.subr.bf16.mxu0 %v938
    %1074 = vmatpush1.bf16.msra.mxu0 %v937
    %1075 = vmatprep.subr.bf16.mxu0 %v944
    %1076 = vmatpush1.bf16.msra.mxu0 %v943
    %1077 = vmatprep.mubr.bf16.mxu0 %v533
    %1078 = vmatmul.mubr.bf16.gmra.mrb[0].mxu0 %v532
    %v1079 = vpop.f32.mrb[0].mxu0
    %v1080 = vadd.f32 %v538, %v1079
    %v1081 = vpop.f32.mrb[0].mxu0
    %v1082 = vadd.f32 %v542, %v1081
    %v1083 = vpop.f32.mrb[0].mxu0
    %v1084 = vpop.f32.mrb[0].mxu0
    %1085 = vdwg.mxu0
    %1086 = vmatprep.subr.bf16.mxu0 %v856
    %1087 = vmatpush1.bf16.msra.mxu0 %v855
    %1088 = vmatprep.subr.bf16.mxu0 %v862
    %1089 = vmatpush1.bf16.msra.mxu0 %v861
    %1090 = vmatprep.subr.bf16.mxu0 %v868
    %1091 = vmatpush1.bf16.msra.mxu0 %v867
    %1092 = vmatprep.subr.bf16.mxu0 %v874
    %1093 = vmatpush1.bf16.msra.mxu0 %v873
    %1094 = vmatprep.subr.bf16.mxu0 %v880
    %1095 = vmatpush1.bf16.msra.mxu0 %v879
    %1096 = vmatprep.subr.bf16.mxu0 %v886
    %1097 = vmatpush1.bf16.msra.mxu0 %v885
    %1098 = vmatprep.subr.bf16.mxu0 %v892
    %1099 = vmatpush1.bf16.msra.mxu0 %v891
    %1100 = vmatprep.subr.bf16.mxu0 %v898
    %1101 = vmatpush1.bf16.msra.mxu0 %v897
    %1102 = vmatprep.subr.bf16.mxu0 %v904
    %1103 = vmatpush1.bf16.msra.mxu0 %v903
    %1104 = vmatprep.subr.bf16.mxu0 %v910
    %1105 = vmatpush1.bf16.msra.mxu0 %v909
    %1106 = vmatprep.subr.bf16.mxu0 %v916
    %1107 = vmatpush1.bf16.msra.mxu0 %v915
    %1108 = vmatprep.subr.bf16.mxu0 %v922
    %1109 = vmatpush1.bf16.msra.mxu0 %v921
    %1110 = vmatprep.subr.bf16.mxu0 %v928
    %1111 = vmatpush1.bf16.msra.mxu0 %v927
    %1112 = vmatprep.subr.bf16.mxu0 %v934
    %1113 = vmatpush1.bf16.msra.mxu0 %v933
    %1114 = vmatprep.subr.bf16.mxu0 %v940
    %1115 = vmatpush1.bf16.msra.mxu0 %v939
    %1116 = vmatprep.subr.bf16.mxu0 %v946
    %1117 = vmatpush1.bf16.msra.mxu0 %v945
    %1118 = vmatprep.mubr.bf16.mxu0 %v533
    %1119 = vmatmul.mubr.bf16.gmra.mrb[0].mxu0 %v532
    %v1120 = vpop.f32.mrb[0].mxu0
    %v1121 = vadd.f32 %v546, %v1120
    %v1122 = vpop.f32.mrb[0].mxu0
    %v1123 = vadd.f32 %v550, %v1122
    %v1124 = vpop.f32.mrb[0].mxu0
    %v1125 = vpop.f32.mrb[0].mxu0
    %1126 = vdwg.mxu0
    %1127 = vmatprep.subr.bf16.mxu0 %v858
    %1128 = vmatpush1.bf16.msra.mxu0 %v857
    %1129 = vmatprep.subr.bf16.mxu0 %v864
    %1130 = vmatpush1.bf16.msra.mxu0 %v863
    %1131 = vmatprep.subr.bf16.mxu0 %v870
    %1132 = vmatpush1.bf16.msra.mxu0 %v869
    %1133 = vmatprep.subr.bf16.mxu0 %v876
    %1134 = vmatpush1.bf16.msra.mxu0 %v875
    %1135 = vmatprep.subr.bf16.mxu0 %v882
    %1136 = vmatpush1.bf16.msra.mxu0 %v881
    %1137 = vmatprep.subr.bf16.mxu0 %v888
    %1138 = vmatpush1.bf16.msra.mxu0 %v887
    %1139 = vmatprep.subr.bf16.mxu0 %v894
    %1140 = vmatpush1.bf16.msra.mxu0 %v893
    %1141 = vmatprep.subr.bf16.mxu0 %v900
    %1142 = vmatpush1.bf16.msra.mxu0 %v899
    %1143 = vmatprep.subr.bf16.mxu0 %v906
    %1144 = vmatpush1.bf16.msra.mxu0 %v905
    %1145 = vmatprep.subr.bf16.mxu0 %v912
    %1146 = vmatpush1.bf16.msra.mxu0 %v911
    %1147 = vmatprep.subr.bf16.mxu0 %v918
    %1148 = vmatpush1.bf16.msra.mxu0 %v917
    %1149 = vmatprep.subr.bf16.mxu0 %v924
    %1150 = vmatpush1.bf16.msra.mxu0 %v923
    %1151 = vmatprep.subr.bf16.mxu0 %v930
    %1152 = vmatpush1.bf16.msra.mxu0 %v929
    %1153 = vmatprep.subr.bf16.mxu0 %v936
    %1154 = vmatpush1.bf16.msra.mxu0 %v935
    %1155 = vmatprep.subr.bf16.mxu0 %v942
    %1156 = vmatpush1.bf16.msra.mxu0 %v941
    %1157 = vmatprep.subr.bf16.mxu0 %v948
    %1158 = vmatpush1.bf16.msra.mxu0 %v947
    %1159 = vmatprep.mubr.bf16.mxu0 %v533
    %1160 = vmatmul.mubr.bf16.gmra.mrb[0].mxu0 %v532
    %v1161 = vpop.f32.mrb[0].mxu0
    %v1162 = vadd.f32 %v554, %v1161
    %v1163 = vpop.f32.mrb[0].mxu0
    %v1164 = vadd.f32 %v558, %v1163
    %v1165 = vpop.f32.mrb[0].mxu0
    %v1166 = vpop.f32.mrb[0].mxu0
    %1167 = vdwg.mxu0
    %v1174 = vcombine.low %v1080, %v1082
    %v1175 = vcombine.low %v1121, %v1123
    %v1176 = vcombine.low %v1162, %v1164
    %1180 = vst [vmem:[#allocation11] sm:$0xff] %v1174
    %1181 = vst [vmem:[#allocation11 + $0x8] sm:$0xff] %v1175
    %1182 = vst [vmem:[#allocation11 + $0x10] sm:$0xff] %v1176
    // Predicated region
    $region58: #{tpu_custom_call.1} parent=1 // pred_check
      _
    $region59: #{tpu_custom_call.1} parent=1 // pred_check_branch
      %1184 = sbr.rel (0) target = $region61
    $region60: #{tpu_custom_call.1} parent=1 // pred_region
      %s1186 = ssub.s32 384, 384
      %1187 = vsyncadd [#allocation4], %s1186
      %s1189 = sshll.u32 [#allocation11], 4
      %s1190 = int_to_ptr.vmem [resolvable:$true] %s1189
      %1192 = dma.vmem_to_hbm [thread:$0]  %s1190, 384, %s9, [#allocation4]
    $region61: #{tpu_custom_call.1} parent=1 // pred_fallthru
      _
    // Predicated region
    $region62: #{tpu_custom_call.1} parent=1 // pred_check
      _
    $region63: #{tpu_custom_call.1} parent=1 // pred_check_branch
      %1194 = sbr.rel (0) target = $region65
    $region64: #{tpu_custom_call.1} parent=1 // pred_region
      %1195 = dma.done [#allocation4], 384
    $region65: #{tpu_custom_call.1} parent=1 // pred_fallthru
      _
    %1196 = vsyncpa [#allocation3], 1
    %1197 = vsyncpa [#allocation6], 1
    %1198 = vsyncpa [#allocation9], 1
    %1199 = vsyncpa [#allocation4], 1

</llo_original>
